<compile_context>
chip_gen: v6e
topology: v6e:2x2x1
jax: 0.10.0
libtpu: 0.0.40
codegen_flags: <defaults>
</compile_context>

<pallas_src>
import numpy as np
import jax
import jax.numpy as jnp
from jax.experimental import pallas as pl
from jax.experimental.pallas import tpu as pltpu

K_HOPS = 3          # PyG TAGConv default K=3
EPS_BN = 1e-5
OUT_PAD = 128       # lane-dense padded output width
NEG_BIG = -1e30     # padded-lane logit bias -> exp underflows to exactly 0


def _node_glam_kernel(x_ref, a_ref,
                      bng_ref, bnb_ref,
                      w1_ref, b1_ref,
                      t1w_ref, t1b_ref,
                      w2_ref, b2_ref,
                      t2w_ref, t2b_ref,
                      w3x_ref, w3h_ref, b3_ref,
                      w4_ref, b4_ref,
                      o_ref):
    f32 = jnp.float32
    bf16 = jnp.bfloat16

    x = x_ref[...]          # (N, IN) f32
    A = a_ref[...]          # (N, N) bf16 (cast once in the wrapper)

    # ---- BatchNorm1d (training-mode batch stats, biased variance), single pass ----
    mean = jnp.mean(x, axis=0, keepdims=True)
    mean_sq = jnp.mean(x * x, axis=0, keepdims=True)
    var = mean_sq - mean * mean
    xn = (x - mean) * jax.lax.rsqrt(var + EPS_BN) * bng_ref[...] + bnb_ref[...]
    xn_bf = xn.astype(bf16)

    # ---- linear1 + relu ----
    h = jnp.maximum(
        jnp.dot(xn_bf, w1_ref[...], preferred_element_type=f32) + b1_ref[...], 0.0)

    # ---- fused TAGConv: stack K+1 hops along lanes (bf16), one 128-deep contraction ----
    def tag(h_in, tw_ref, tb_ref):
        cur = h_in                               # f32 accumulator output
        hops_bf = []
        for k in range(K_HOPS + 1):
            cur_bf = cur.astype(bf16)            # reused for propagation AND stacking
            hops_bf.append(cur_bf)
            if k < K_HOPS:
                cur = jnp.dot(A, cur_bf, preferred_element_type=f32)
        stacked = jnp.concatenate(hops_bf, axis=1)          # (N, (K+1)*F) bf16
        return jnp.dot(stacked, tw_ref[...], preferred_element_type=f32) + tb_ref[...]

    # ---- TAGConv #1 + relu ----
    h = jnp.maximum(tag(h, t1w_ref, t1b_ref), 0.0)

    # ---- linear2 + relu ----
    h = jnp.maximum(
        jnp.dot(h.astype(bf16), w2_ref[...], preferred_element_type=f32) + b2_ref[...], 0.0)

    # ---- TAGConv #2 + relu ----
    h = jnp.maximum(tag(h, t2w_ref, t2b_ref), 0.0)

    # ---- "concat" via split weights: xn @ w3_x + h @ w3_h + b3, relu ----
    a = (jnp.dot(xn_bf, w3x_ref[...], preferred_element_type=f32)
         + jnp.dot(h.astype(bf16), w3h_ref[...], preferred_element_type=f32)
         + b3_ref[...])
    a = jnp.maximum(a, 0.0)

    # ---- linear4 (lane-padded to 128, padded bias = -1e30) + softmax ----
    logits = jnp.dot(a.astype(bf16), w4_ref[...], preferred_element_type=f32) + b4_ref[...]
    logits = logits - jnp.max(logits, axis=-1, keepdims=True)
    e = jnp.exp(logits)
    inv = pl.reciprocal(jnp.sum(e, axis=-1, keepdims=True), approx=False)
    o_ref[...] = e * inv


def gcn_norm_dense(edge_index, num_nodes):
    """Dense D^{-1/2} A D^{-1/2} (no self loops), matching PyG gcn_norm for TAGConv.
    Scatter glue stays in plain JAX."""
    src, dst = edge_index[0], edge_index[1]
    A = jnp.zeros((num_nodes, num_nodes), jnp.float32).at[dst, src].add(1.0)
    deg = A.sum(axis=1)
    dinv = jnp.where(deg > 0, 1.0 / jnp.sqrt(deg), 0.0)
    return dinv[:, None] * A * dinv[None, :]


def _prep_params(params, input_dim):
    """Wrapper-side weight prep: bf16 casts, flattened TAG weights, split w3, padded w4/b4."""
    bf16 = jnp.bfloat16
    out_dim = params["w4"].shape[-1]
    w4p = jnp.zeros((params["w4"].shape[0], OUT_PAD), jnp.float32).at[:, :out_dim].set(params["w4"])
    b4p = jnp.full((1, OUT_PAD), NEG_BIG, jnp.float32).at[:, :out_dim].set(params["b4"])
    return dict(
        bn_g=params["bn_g"], bn_b=params["bn_b"],
        w1=params["w1"].astype(bf16), b1=params["b1"],
        t1w=params["t1w"].reshape(-1, params["t1w"].shape[-1]).astype(bf16), t1b=params["t1b"],
        w2=params["w2"].astype(bf16), b2=params["b2"],
        t2w=params["t2w"].reshape(-1, params["t2w"].shape[-1]).astype(bf16), t2b=params["t2b"],
        w3x=params["w3"][:input_dim].astype(bf16),
        w3h=params["w3"][input_dim:].astype(bf16), b3=params["b3"],
        w4=w4p.astype(bf16), b4=b4p,
    )


@jax.jit
def node_glam_forward(x, a_norm, params):
    n, input_dim = x.shape
    out_dim = params["b4"].shape[-1]
    pp = _prep_params(params, input_dim)
    a_bf = a_norm.astype(jnp.bfloat16)

    args = (x, a_bf,
            pp["bn_g"], pp["bn_b"],
            pp["w1"], pp["b1"],
            pp["t1w"], pp["t1b"],
            pp["w2"], pp["b2"],
            pp["t2w"], pp["t2b"],
            pp["w3x"], pp["w3h"], pp["b3"],
            pp["w4"], pp["b4"])

    # --- static cost estimate (shapes are static at trace time) ---
    h0 = params["w1"].shape[1]
    h1 = params["t1w"].shape[-1]
    h2 = params["w2"].shape[1]
    h3 = params["t2w"].shape[-1]
    h4 = params["w3"].shape[1]
    flops = (2 * n * input_dim * h0                       # linear1
             + K_HOPS * 2 * n * n * h0                    # TAG1 propagation
             + 2 * n * (K_HOPS + 1) * h0 * h1             # TAG1 fused matmul
             + 2 * n * h1 * h2                            # linear2
             + K_HOPS * 2 * n * n * h2                    # TAG2 propagation
             + 2 * n * (K_HOPS + 1) * h2 * h3             # TAG2 fused matmul
             + 2 * n * (input_dim * h4 + h3 * h4)         # split linear3
             + 2 * n * h4 * OUT_PAD)                      # linear4 (padded)
    bytes_accessed = sum(int(a.size) * a.dtype.itemsize for a in args) + n * OUT_PAD * 4
    transcendentals = n * OUT_PAD + n + input_dim         # exp + reciprocal + rsqrt

    vmem = pl.BlockSpec(memory_space=pltpu.MemorySpace.VMEM)
    out_padded = pl.pallas_call(
        _node_glam_kernel,
        out_shape=jax.ShapeDtypeStruct((n, OUT_PAD), jnp.float32),
        in_specs=[vmem] * len(args),
        out_specs=vmem,
        compiler_params=pltpu.CompilerParams(vmem_limit_bytes=64 * 1024 * 1024),
        cost_estimate=pl.CostEstimate(flops=int(flops),
                                      transcendentals=int(transcendentals),
                                      bytes_accessed=int(bytes_accessed)),
    )(*args)
    return out_padded[:, :out_dim]


def init_params(key, input_, h, output_):
    keys = jax.random.split(key, 16)
    g = lambda k, shape, fan_in: (jax.random.normal(k, shape, jnp.float32)
                                  / jnp.sqrt(jnp.float32(fan_in)))
    return {
        "bn_g": jnp.ones((1, input_), jnp.float32),
        "bn_b": jnp.zeros((1, input_), jnp.float32),
        "w1": g(keys[0], (input_, h[0]), input_),
        "b1": g(keys[1], (1, h[0]), input_),
        "t1w": g(keys[2], (K_HOPS + 1, h[0], h[1]), h[0]),
        "t1b": g(keys[3], (1, h[1]), h[0]),
        "w2": g(keys[4], (h[1], h[2]), h[1]),
        "b2": g(keys[5], (1, h[2]), h[1]),
        "t2w": g(keys[6], (K_HOPS + 1, h[2], h[3]), h[2]),
        "t2b": g(keys[7], (1, h[3]), h[2]),
        "w3": g(keys[8], (h[3] + input_, h[4]), h[3] + input_),
        "b3": g(keys[9], (1, h[4]), h[3] + input_),
        "w4": g(keys[10], (h[4], output_), h[4]),
        "b4": g(keys[11], (1, output_), h[4]),
    }


def _bf(v):
    return v.astype(jnp.bfloat16)


@jax.jit
def matched_reference(x, a_norm, params):
    """Pure-JAX model of the kernel's exact numerics (bf16 matmul operands, f32 accumulation,
    fused stacked-hop TAG, split w3, single-pass BN)."""
    f32 = jnp.float32
    A = _bf(a_norm)
    mean = jnp.mean(x, axis=0, keepdims=True)
    var = jnp.mean(x * x, axis=0, keepdims=True) - mean * mean
    xn = (x - mean) * jax.lax.rsqrt(var + EPS_BN) * params["bn_g"] + params["bn_b"]

    def dot(a, b):
        return jnp.dot(_bf(a), _bf(b), preferred_element_type=f32)

    def tag(h_in, tw, tb):
        hops, cur = [h_in], h_in
        for _ in range(K_HOPS):
            cur = jnp.dot(A, _bf(cur), preferred_element_type=f32)
            hops.append(cur)
        stacked = jnp.concatenate(hops, axis=1)
        return dot(stacked, tw.reshape(-1, tw.shape[-1])) + tb

    h = jax.nn.relu(dot(xn, params["w1"]) + params["b1"])
    h = jax.nn.relu(tag(h, params["t1w"], params["t1b"]))
    h = jax.nn.relu(dot(h, params["w2"]) + params["b2"])
    h = jax.nn.relu(tag(h, params["t2w"], params["t2b"]))
    inp = x.shape[1]
    a = jax.nn.relu(dot(xn, params["w3"][:inp]) + dot(h, params["w3"][inp:]) + params["b3"])
    logits = dot(a, params["w4"]) + params["b4"]
    logits = logits - jnp.max(logits, axis=-1, keepdims=True)
    e = jnp.exp(logits)
    return e / jnp.sum(e, axis=-1, keepdims=True)


@jax.jit
def reference_forward_f32(x, a_norm, p):
    """Original full-f32 semantics of the PyTorch module (loose sanity check)."""
    mean = jnp.mean(x, axis=0, keepdims=True)
    var = jnp.mean((x - mean) ** 2, axis=0, keepdims=True)
    xn = (x - mean) / jnp.sqrt(var + EPS_BN) * p["bn_g"] + p["bn_b"]
    h = jax.nn.relu(xn @ p["w1"] + p["b1"])
    out, cur = h @ p["t1w"][0], h
    for k in range(1, K_HOPS + 1):
        cur = a_norm @ cur
        out = out + cur @ p["t1w"][k]
    h = jax.nn.relu(out + p["t1b"])
    h = jax.nn.relu(h @ p["w2"] + p["b2"])
    out, cur = h @ p["t2w"][0], h
    for k in range(1, K_HOPS + 1):
        cur = a_norm @ cur
        out = out + cur @ p["t2w"][k]
    h = jax.nn.relu(out + p["t2b"])
    a = jnp.concatenate([xn, h], axis=1)
    a = jax.nn.relu(a @ p["w3"] + p["b3"])
    a = a @ p["w4"] + p["b4"]
    return jax.nn.softmax(a, axis=-1)


if __name__ == "__main__":
    N = 64            # number of graph nodes
    INPUT = 16        # input feature dim
    H = [32, 32, 32, 32, 32]
    OUTPUT = 8
    NUM_EDGES = 256

    key = jax.random.PRNGKey(0)
    kx, ke_src, ke_dst, kp = jax.random.split(key, 4)

    x = jax.random.normal(kx, (N, INPUT), jnp.float32)
    edge_index = jnp.stack([
        jax.random.randint(ke_src, (NUM_EDGES,), 0, N),
        jax.random.randint(ke_dst, (NUM_EDGES,), 0, N),
    ], axis=0)

    a_norm = gcn_norm_dense(edge_index, N)          # scatter glue in plain JAX
    params = init_params(kp, INPUT, H, OUTPUT)

    y = jax.block_until_ready(node_glam_forward(x, a_norm, params))
    assert y.shape == (N, OUTPUT)

    # Tight check against a pure-JAX replica of the kernel's exact numerical policy.
    y_match = jax.block_until_ready(matched_reference(x, a_norm, params))
    np.testing.assert_allclose(np.asarray(y), np.asarray(y_match), rtol=1e-4, atol=1e-5)

    # Loose check against the original full-f32 semantics (bf16 matmul-operand error budget).
    y_f32 = jax.block_until_ready(reference_forward_f32(x, a_norm, params))
    np.testing.assert_allclose(np.asarray(y), np.asarray(y_f32), rtol=1e-1, atol=1e-1)

    print("KERNEL_OK")
</pallas_src>

<mosaic_0001>
module attributes {stable_mosaic.version = 11 : i64} {
  func.func @_node_glam_kernel(%arg0: memref<64x16xf32, #tpu.memory_space<vmem>>, %arg1: memref<64x64xbf16, #tpu.memory_space<vmem>>, %arg2: memref<1x16xf32, #tpu.memory_space<vmem>>, %arg3: memref<1x16xf32, #tpu.memory_space<vmem>>, %arg4: memref<16x32xbf16, #tpu.memory_space<vmem>>, %arg5: memref<1x32xf32, #tpu.memory_space<vmem>>, %arg6: memref<128x32xbf16, #tpu.memory_space<vmem>>, %arg7: memref<1x32xf32, #tpu.memory_space<vmem>>, %arg8: memref<32x32xbf16, #tpu.memory_space<vmem>>, %arg9: memref<1x32xf32, #tpu.memory_space<vmem>>, %arg10: memref<128x32xbf16, #tpu.memory_space<vmem>>, %arg11: memref<1x32xf32, #tpu.memory_space<vmem>>, %arg12: memref<16x32xbf16, #tpu.memory_space<vmem>>, %arg13: memref<32x32xbf16, #tpu.memory_space<vmem>>, %arg14: memref<1x32xf32, #tpu.memory_space<vmem>>, %arg15: memref<32x128xbf16, #tpu.memory_space<vmem>>, %arg16: memref<1x128xf32, #tpu.memory_space<vmem>>, %arg17: memref<64x128xf32, #tpu.memory_space<vmem>>) attributes {dimension_semantics = [], scalar_prefetch = 0 : i64, scratch_operands = 0 : i64, tpu.core_type = #tpu.core_type<tc>} {
    %c0 = arith.constant 0 : index
    %c0_0 = arith.constant 0 : index
    %0 = vector.load %arg0[%c0, %c0_0] : memref<64x16xf32, #tpu.memory_space<vmem>>, vector<64x16xf32>
    %c0_1 = arith.constant 0 : index
    %c0_2 = arith.constant 0 : index
    %1 = vector.load %arg1[%c0_1, %c0_2] : memref<64x64xbf16, #tpu.memory_space<vmem>>, vector<64x64xbf16>
    %cst = arith.constant dense<0.000000e+00> : vector<16xf32>
    %2 = vector.multi_reduction <add>, %0, %cst [0] : vector<64x16xf32> to vector<16xf32>
    %3 = vector.shape_cast %2 : vector<16xf32> to vector<1x16xf32>
    %cst_3 = arith.constant 6.400000e+01 : f32
    %4 = vector.broadcast %cst_3 : f32 to vector<1x16xf32>
    %5 = arith.divf %3, %4 : vector<1x16xf32>
    %6 = arith.mulf %0, %0 : vector<64x16xf32>
    %cst_4 = arith.constant dense<0.000000e+00> : vector<16xf32>
    %7 = vector.multi_reduction <add>, %6, %cst_4 [0] : vector<64x16xf32> to vector<16xf32>
    %8 = vector.shape_cast %7 : vector<16xf32> to vector<1x16xf32>
    %cst_5 = arith.constant 6.400000e+01 : f32
    %9 = vector.broadcast %cst_5 : f32 to vector<1x16xf32>
    %10 = arith.divf %8, %9 : vector<1x16xf32>
    %11 = arith.mulf %5, %5 : vector<1x16xf32>
    %12 = arith.subf %10, %11 : vector<1x16xf32>
    %13 = vector.broadcast %5 : vector<1x16xf32> to vector<64x16xf32>
    %14 = arith.subf %0, %13 : vector<64x16xf32>
    %cst_6 = arith.constant 9.99999974E-6 : f32
    %15 = vector.broadcast %cst_6 : f32 to vector<1x16xf32>
    %16 = arith.addf %12, %15 : vector<1x16xf32>
    %17 = math.rsqrt %16 : vector<1x16xf32>
    %18 = vector.broadcast %17 : vector<1x16xf32> to vector<64x16xf32>
    %19 = arith.mulf %14, %18 : vector<64x16xf32>
    %c0_7 = arith.constant 0 : index
    %c0_8 = arith.constant 0 : index
    %20 = vector.load %arg2[%c0_7, %c0_8] : memref<1x16xf32, #tpu.memory_space<vmem>>, vector<1x16xf32>
    %21 = vector.broadcast %20 : vector<1x16xf32> to vector<64x16xf32>
    %22 = arith.mulf %19, %21 : vector<64x16xf32>
    %c0_9 = arith.constant 0 : index
    %c0_10 = arith.constant 0 : index
    %23 = vector.load %arg3[%c0_9, %c0_10] : memref<1x16xf32, #tpu.memory_space<vmem>>, vector<1x16xf32>
    %24 = vector.broadcast %23 : vector<1x16xf32> to vector<64x16xf32>
    %25 = arith.addf %22, %24 : vector<64x16xf32>
    %26 = arith.truncf %25 : vector<64x16xf32> to vector<64x16xbf16>
    %c0_11 = arith.constant 0 : index
    %c0_12 = arith.constant 0 : index
    %27 = vector.load %arg4[%c0_11, %c0_12] : memref<16x32xbf16, #tpu.memory_space<vmem>>, vector<16x32xbf16>
    %cst_13 = arith.constant dense<0.000000e+00> : vector<64x32xf32>
    %28 = tpu.matmul %26, %27, %cst_13 {dimension_numbers = #tpu.dot_dimension_numbers<[1], [0], [0], [1], [0, 0, 1, 1], [], []>} : vector<64x16xbf16>, vector<16x32xbf16>, vector<64x32xf32> -> vector<64x32xf32>
    %c0_14 = arith.constant 0 : index
    %c0_15 = arith.constant 0 : index
    %29 = vector.load %arg5[%c0_14, %c0_15] : memref<1x32xf32, #tpu.memory_space<vmem>>, vector<1x32xf32>
    %30 = vector.broadcast %29 : vector<1x32xf32> to vector<64x32xf32>
    %31 = arith.addf %28, %30 : vector<64x32xf32>
    %cst_16 = arith.constant 0.000000e+00 : f32
    %32 = vector.broadcast %cst_16 : f32 to vector<64x32xf32>
    %33 = arith.maximumf %31, %32 : vector<64x32xf32>
    %34 = arith.truncf %33 : vector<64x32xf32> to vector<64x32xbf16>
    %cst_17 = arith.constant dense<0.000000e+00> : vector<64x32xf32>
    %35 = tpu.matmul %1, %34, %cst_17 {dimension_numbers = #tpu.dot_dimension_numbers<[1], [0], [0], [1], [0, 0, 1, 1], [], []>} : vector<64x64xbf16>, vector<64x32xbf16>, vector<64x32xf32> -> vector<64x32xf32>
    %36 = arith.truncf %35 : vector<64x32xf32> to vector<64x32xbf16>
    %cst_18 = arith.constant dense<0.000000e+00> : vector<64x32xf32>
    %37 = tpu.matmul %1, %36, %cst_18 {dimension_numbers = #tpu.dot_dimension_numbers<[1], [0], [0], [1], [0, 0, 1, 1], [], []>} : vector<64x64xbf16>, vector<64x32xbf16>, vector<64x32xf32> -> vector<64x32xf32>
    %38 = arith.truncf %37 : vector<64x32xf32> to vector<64x32xbf16>
    %cst_19 = arith.constant dense<0.000000e+00> : vector<64x32xf32>
    %39 = tpu.matmul %1, %38, %cst_19 {dimension_numbers = #tpu.dot_dimension_numbers<[1], [0], [0], [1], [0, 0, 1, 1], [], []>} : vector<64x64xbf16>, vector<64x32xbf16>, vector<64x32xf32> -> vector<64x32xf32>
    %40 = arith.truncf %39 : vector<64x32xf32> to vector<64x32xbf16>
    %41 = tpu.concatenate %34, %36, %38, %40 in 1 : vector<64x32xbf16>, vector<64x32xbf16>, vector<64x32xbf16>, vector<64x32xbf16> -> vector<64x128xbf16>
    %c0_20 = arith.constant 0 : index
    %c0_21 = arith.constant 0 : index
    %42 = vector.load %arg6[%c0_20, %c0_21] : memref<128x32xbf16, #tpu.memory_space<vmem>>, vector<128x32xbf16>
    %cst_22 = arith.constant dense<0.000000e+00> : vector<64x32xf32>
    %43 = tpu.matmul %41, %42, %cst_22 {dimension_numbers = #tpu.dot_dimension_numbers<[1], [0], [0], [1], [0, 0, 1, 1], [], []>} : vector<64x128xbf16>, vector<128x32xbf16>, vector<64x32xf32> -> vector<64x32xf32>
    %c0_23 = arith.constant 0 : index
    %c0_24 = arith.constant 0 : index
    %44 = vector.load %arg7[%c0_23, %c0_24] : memref<1x32xf32, #tpu.memory_space<vmem>>, vector<1x32xf32>
    %45 = vector.broadcast %44 : vector<1x32xf32> to vector<64x32xf32>
    %46 = arith.addf %43, %45 : vector<64x32xf32>
    %cst_25 = arith.constant 0.000000e+00 : f32
    %47 = vector.broadcast %cst_25 : f32 to vector<64x32xf32>
    %48 = arith.maximumf %46, %47 : vector<64x32xf32>
    %49 = arith.truncf %48 : vector<64x32xf32> to vector<64x32xbf16>
    %c0_26 = arith.constant 0 : index
    %c0_27 = arith.constant 0 : index
    %50 = vector.load %arg8[%c0_26, %c0_27] : memref<32x32xbf16, #tpu.memory_space<vmem>>, vector<32x32xbf16>
    %cst_28 = arith.constant dense<0.000000e+00> : vector<64x32xf32>
    %51 = tpu.matmul %49, %50, %cst_28 {dimension_numbers = #tpu.dot_dimension_numbers<[1], [0], [0], [1], [0, 0, 1, 1], [], []>} : vector<64x32xbf16>, vector<32x32xbf16>, vector<64x32xf32> -> vector<64x32xf32>
    %c0_29 = arith.constant 0 : index
    %c0_30 = arith.constant 0 : index
    %52 = vector.load %arg9[%c0_29, %c0_30] : memref<1x32xf32, #tpu.memory_space<vmem>>, vector<1x32xf32>
    %53 = vector.broadcast %52 : vector<1x32xf32> to vector<64x32xf32>
    %54 = arith.addf %51, %53 : vector<64x32xf32>
    %cst_31 = arith.constant 0.000000e+00 : f32
    %55 = vector.broadcast %cst_31 : f32 to vector<64x32xf32>
    %56 = arith.maximumf %54, %55 : vector<64x32xf32>
    %57 = arith.truncf %56 : vector<64x32xf32> to vector<64x32xbf16>
    %cst_32 = arith.constant dense<0.000000e+00> : vector<64x32xf32>
    %58 = tpu.matmul %1, %57, %cst_32 {dimension_numbers = #tpu.dot_dimension_numbers<[1], [0], [0], [1], [0, 0, 1, 1], [], []>} : vector<64x64xbf16>, vector<64x32xbf16>, vector<64x32xf32> -> vector<64x32xf32>
    %59 = arith.truncf %58 : vector<64x32xf32> to vector<64x32xbf16>
    %cst_33 = arith.constant dense<0.000000e+00> : vector<64x32xf32>
    %60 = tpu.matmul %1, %59, %cst_33 {dimension_numbers = #tpu.dot_dimension_numbers<[1], [0], [0], [1], [0, 0, 1, 1], [], []>} : vector<64x64xbf16>, vector<64x32xbf16>, vector<64x32xf32> -> vector<64x32xf32>
    %61 = arith.truncf %60 : vector<64x32xf32> to vector<64x32xbf16>
    %cst_34 = arith.constant dense<0.000000e+00> : vector<64x32xf32>
    %62 = tpu.matmul %1, %61, %cst_34 {dimension_numbers = #tpu.dot_dimension_numbers<[1], [0], [0], [1], [0, 0, 1, 1], [], []>} : vector<64x64xbf16>, vector<64x32xbf16>, vector<64x32xf32> -> vector<64x32xf32>
    %63 = arith.truncf %62 : vector<64x32xf32> to vector<64x32xbf16>
    %64 = tpu.concatenate %57, %59, %61, %63 in 1 : vector<64x32xbf16>, vector<64x32xbf16>, vector<64x32xbf16>, vector<64x32xbf16> -> vector<64x128xbf16>
    %c0_35 = arith.constant 0 : index
    %c0_36 = arith.constant 0 : index
    %65 = vector.load %arg10[%c0_35, %c0_36] : memref<128x32xbf16, #tpu.memory_space<vmem>>, vector<128x32xbf16>
    %cst_37 = arith.constant dense<0.000000e+00> : vector<64x32xf32>
    %66 = tpu.matmul %64, %65, %cst_37 {dimension_numbers = #tpu.dot_dimension_numbers<[1], [0], [0], [1], [0, 0, 1, 1], [], []>} : vector<64x128xbf16>, vector<128x32xbf16>, vector<64x32xf32> -> vector<64x32xf32>
    %c0_38 = arith.constant 0 : index
    %c0_39 = arith.constant 0 : index
    %67 = vector.load %arg11[%c0_38, %c0_39] : memref<1x32xf32, #tpu.memory_space<vmem>>, vector<1x32xf32>
    %68 = vector.broadcast %67 : vector<1x32xf32> to vector<64x32xf32>
    %69 = arith.addf %66, %68 : vector<64x32xf32>
    %cst_40 = arith.constant 0.000000e+00 : f32
    %70 = vector.broadcast %cst_40 : f32 to vector<64x32xf32>
    %71 = arith.maximumf %69, %70 : vector<64x32xf32>
    %c0_41 = arith.constant 0 : index
    %c0_42 = arith.constant 0 : index
    %72 = vector.load %arg12[%c0_41, %c0_42] : memref<16x32xbf16, #tpu.memory_space<vmem>>, vector<16x32xbf16>
    %cst_43 = arith.constant dense<0.000000e+00> : vector<64x32xf32>
    %73 = tpu.matmul %26, %72, %cst_43 {dimension_numbers = #tpu.dot_dimension_numbers<[1], [0], [0], [1], [0, 0, 1, 1], [], []>} : vector<64x16xbf16>, vector<16x32xbf16>, vector<64x32xf32> -> vector<64x32xf32>
    %74 = arith.truncf %71 : vector<64x32xf32> to vector<64x32xbf16>
    %c0_44 = arith.constant 0 : index
    %c0_45 = arith.constant 0 : index
    %75 = vector.load %arg13[%c0_44, %c0_45] : memref<32x32xbf16, #tpu.memory_space<vmem>>, vector<32x32xbf16>
    %cst_46 = arith.constant dense<0.000000e+00> : vector<64x32xf32>
    %76 = tpu.matmul %74, %75, %cst_46 {dimension_numbers = #tpu.dot_dimension_numbers<[1], [0], [0], [1], [0, 0, 1, 1], [], []>} : vector<64x32xbf16>, vector<32x32xbf16>, vector<64x32xf32> -> vector<64x32xf32>
    %77 = arith.addf %73, %76 : vector<64x32xf32>
    %c0_47 = arith.constant 0 : index
    %c0_48 = arith.constant 0 : index
    %78 = vector.load %arg14[%c0_47, %c0_48] : memref<1x32xf32, #tpu.memory_space<vmem>>, vector<1x32xf32>
    %79 = vector.broadcast %78 : vector<1x32xf32> to vector<64x32xf32>
    %80 = arith.addf %77, %79 : vector<64x32xf32>
    %cst_49 = arith.constant 0.000000e+00 : f32
    %81 = vector.broadcast %cst_49 : f32 to vector<64x32xf32>
    %82 = arith.maximumf %80, %81 : vector<64x32xf32>
    %83 = arith.truncf %82 : vector<64x32xf32> to vector<64x32xbf16>
    %c0_50 = arith.constant 0 : index
    %c0_51 = arith.constant 0 : index
    %84 = vector.load %arg15[%c0_50, %c0_51] : memref<32x128xbf16, #tpu.memory_space<vmem>>, vector<32x128xbf16>
    %cst_52 = arith.constant dense<0.000000e+00> : vector<64x128xf32>
    %85 = tpu.matmul %83, %84, %cst_52 {dimension_numbers = #tpu.dot_dimension_numbers<[1], [0], [0], [1], [0, 0, 1, 1], [], []>} : vector<64x32xbf16>, vector<32x128xbf16>, vector<64x128xf32> -> vector<64x128xf32>
    %c0_53 = arith.constant 0 : index
    %c0_54 = arith.constant 0 : index
    %86 = vector.load %arg16[%c0_53, %c0_54] : memref<1x128xf32, #tpu.memory_space<vmem>>, vector<1x128xf32>
    %87 = vector.broadcast %86 : vector<1x128xf32> to vector<64x128xf32>
    %88 = arith.addf %85, %87 : vector<64x128xf32>
    %cst_55 = arith.constant dense<0xFF800000> : vector<64xf32>
    %89 = vector.multi_reduction <maximumf>, %88, %cst_55 [1] : vector<64x128xf32> to vector<64xf32>
    %90 = vector.shape_cast %89 : vector<64xf32> to vector<64x1xf32>
    %91 = vector.broadcast %90 : vector<64x1xf32> to vector<64x128xf32>
    %92 = arith.subf %88, %91 : vector<64x128xf32>
    %93 = math.exp %92 : vector<64x128xf32>
    %cst_56 = arith.constant dense<0.000000e+00> : vector<64xf32>
    %94 = vector.multi_reduction <add>, %93, %cst_56 [1] : vector<64x128xf32> to vector<64xf32>
    %95 = vector.shape_cast %94 : vector<64xf32> to vector<64x1xf32>
    %96 = tpu.reciprocal %95 : vector<64x1xf32> -> vector<64x1xf32>
    %97 = vector.broadcast %96 : vector<64x1xf32> to vector<64x128xf32>
    %98 = arith.mulf %93, %97 : vector<64x128xf32>
    %c0_57 = arith.constant 0 : index
    %c0_58 = arith.constant 0 : index
    %99 = vector.load %arg17[%c0_57, %c0_58] : memref<64x128xf32, #tpu.memory_space<vmem>>, vector<64x128xf32>
    tpu.vector_store %arg17[%c0_57, %c0_58], %98 {strides = array<i32>} : memref<64x128xf32, #tpu.memory_space<vmem>>, vector<64x128xf32>,
    return
  }
}

</mosaic_0001>

<llo_original>
// kernel: node_glam_forward.1
$region0: #{node_glam_forward.1}
  #allocation0 [shape = 'u32[]', space=smem, size = 0x4, offset = 0x4, fixed_abs, tag = 'smem constant byte address 0x4 - core index']
  #allocation1 [shape = 'u32[144,128]{1,0:T(1,128)}', space=vmem, size = 0x12000, scoped, tag = 'internal scratch']
  %s0 = inlined_call_operand.vmem [shape: f32[64,16], index: 0, kind: input, shape index: {}]
  %s1 = inlined_call_operand.vmem [shape: bf16[64,64], index: 1, kind: input, shape index: {}]
  %s2 = inlined_call_operand.vmem [shape: f32[1,16], index: 2, kind: input, shape index: {}]
  %s3 = inlined_call_operand.vmem [shape: f32[1,16], index: 3, kind: input, shape index: {}]
  %s4 = inlined_call_operand.vmem [shape: bf16[16,32], index: 4, kind: input, shape index: {}]
  %s5 = inlined_call_operand.vmem [shape: f32[1,32], index: 5, kind: input, shape index: {}]
  %s6 = inlined_call_operand.vmem [shape: bf16[128,32], index: 6, kind: input, shape index: {}]
  %s7 = inlined_call_operand.vmem [shape: f32[1,32], index: 7, kind: input, shape index: {}]
  %s8 = inlined_call_operand.vmem [shape: bf16[32,32], index: 8, kind: input, shape index: {}]
  %s9 = inlined_call_operand.vmem [shape: f32[1,32], index: 9, kind: input, shape index: {}]
  %s10 = inlined_call_operand.vmem [shape: bf16[128,32], index: 10, kind: input, shape index: {}]
  %s11 = inlined_call_operand.vmem [shape: f32[1,32], index: 11, kind: input, shape index: {}]
  %s12 = inlined_call_operand.vmem [shape: bf16[16,32], index: 12, kind: input, shape index: {}]
  %s13 = inlined_call_operand.vmem [shape: bf16[32,32], index: 13, kind: input, shape index: {}]
  %s14 = inlined_call_operand.vmem [shape: f32[1,32], index: 14, kind: input, shape index: {}]
  %s15 = inlined_call_operand.vmem [shape: bf16[32,128], index: 15, kind: input, shape index: {}]
  %s16 = inlined_call_operand.vmem [shape: f32[1,128], index: 16, kind: input, shape index: {}]
  %s17 = inlined_call_operand.vmem [shape: f32[64,128], index: 17, kind: output, shape index: {}]
  %s18 = sld [smem:[#allocation0]]
  $region78: #{node_glam_forward.1} parent=0
    _
  %s20 = ssub.s32 1, %s18
  %s21 = scalar_select 0, %s20, %s18
  // Predicated region
  $region2: #{node_glam_forward.1} parent=0 // pred_check
    _
  $region3: #{node_glam_forward.1} parent=0 // pred_check_branch
    %23 = sbr.rel (0) target = $region5
  $region4: #{node_glam_forward.1} parent=0 // pred_region
    _
  $region5: #{node_glam_forward.1} parent=0 // pred_fallthru
    _
  // Predicated region
  $region6: #{node_glam_forward.1} parent=0 // pred_check
    _
  $region7: #{node_glam_forward.1} parent=0 // pred_check_branch
    %25 = sbr.rel (0) target = $region9
  $region8: #{node_glam_forward.1} parent=0 // pred_region
    _
  $region9: #{node_glam_forward.1} parent=0 // pred_fallthru
    _
  // Predicated region
  $region10: #{node_glam_forward.1} parent=0 // pred_check
    _
  $region11: #{node_glam_forward.1} parent=0 // pred_check_branch
    %27 = sbr.rel (0) target = $region13
  $region12: #{node_glam_forward.1} parent=0 // pred_region
    _
  $region13: #{node_glam_forward.1} parent=0 // pred_fallthru
    _
  // Predicated region
  $region14: #{node_glam_forward.1} parent=0 // pred_check
    _
  $region15: #{node_glam_forward.1} parent=0 // pred_check_branch
    %29 = sbr.rel (0) target = $region17
  $region16: #{node_glam_forward.1} parent=0 // pred_region
    _
  $region17: #{node_glam_forward.1} parent=0 // pred_fallthru
    _
  // Predicated region
  $region18: #{node_glam_forward.1} parent=0 // pred_check
    _
  $region19: #{node_glam_forward.1} parent=0 // pred_check_branch
    %31 = sbr.rel (0) target = $region21
  $region20: #{node_glam_forward.1} parent=0 // pred_region
    _
  $region21: #{node_glam_forward.1} parent=0 // pred_fallthru
    _
  // Predicated region
  $region22: #{node_glam_forward.1} parent=0 // pred_check
    _
  $region23: #{node_glam_forward.1} parent=0 // pred_check_branch
    %33 = sbr.rel (0) target = $region25
  $region24: #{node_glam_forward.1} parent=0 // pred_region
    _
  $region25: #{node_glam_forward.1} parent=0 // pred_fallthru
    _
  // Predicated region
  $region26: #{node_glam_forward.1} parent=0 // pred_check
    _
  $region27: #{node_glam_forward.1} parent=0 // pred_check_branch
    %35 = sbr.rel (0) target = $region29
  $region28: #{node_glam_forward.1} parent=0 // pred_region
    _
  $region29: #{node_glam_forward.1} parent=0 // pred_fallthru
    _
  // Predicated region
  $region30: #{node_glam_forward.1} parent=0 // pred_check
    _
  $region31: #{node_glam_forward.1} parent=0 // pred_check_branch
    %37 = sbr.rel (0) target = $region33
  $region32: #{node_glam_forward.1} parent=0 // pred_region
    _
  $region33: #{node_glam_forward.1} parent=0 // pred_fallthru
    _
  // Predicated region
  $region34: #{node_glam_forward.1} parent=0 // pred_check
    _
  $region35: #{node_glam_forward.1} parent=0 // pred_check_branch
    %39 = sbr.rel (0) target = $region37
  $region36: #{node_glam_forward.1} parent=0 // pred_region
    _
  $region37: #{node_glam_forward.1} parent=0 // pred_fallthru
    _
  // Predicated region
  $region38: #{node_glam_forward.1} parent=0 // pred_check
    _
  $region39: #{node_glam_forward.1} parent=0 // pred_check_branch
    %41 = sbr.rel (0) target = $region41
  $region40: #{node_glam_forward.1} parent=0 // pred_region
    _
  $region41: #{node_glam_forward.1} parent=0 // pred_fallthru
    _
  // Predicated region
  $region42: #{node_glam_forward.1} parent=0 // pred_check
    _
  $region43: #{node_glam_forward.1} parent=0 // pred_check_branch
    %43 = sbr.rel (0) target = $region45
  $region44: #{node_glam_forward.1} parent=0 // pred_region
    _
  $region45: #{node_glam_forward.1} parent=0 // pred_fallthru
    _
  // Predicated region
  $region46: #{node_glam_forward.1} parent=0 // pred_check
    _
  $region47: #{node_glam_forward.1} parent=0 // pred_check_branch
    %45 = sbr.rel (0) target = $region49
  $region48: #{node_glam_forward.1} parent=0 // pred_region
    _
  $region49: #{node_glam_forward.1} parent=0 // pred_fallthru
    _
  // Predicated region
  $region50: #{node_glam_forward.1} parent=0 // pred_check
    _
  $region51: #{node_glam_forward.1} parent=0 // pred_check_branch
    %47 = sbr.rel (0) target = $region53
  $region52: #{node_glam_forward.1} parent=0 // pred_region
    _
  $region53: #{node_glam_forward.1} parent=0 // pred_fallthru
    _
  // Predicated region
  $region54: #{node_glam_forward.1} parent=0 // pred_check
    _
  $region55: #{node_glam_forward.1} parent=0 // pred_check_branch
    %49 = sbr.rel (0) target = $region57
  $region56: #{node_glam_forward.1} parent=0 // pred_region
    _
  $region57: #{node_glam_forward.1} parent=0 // pred_fallthru
    _
  // Predicated region
  $region58: #{node_glam_forward.1} parent=0 // pred_check
    _
  $region59: #{node_glam_forward.1} parent=0 // pred_check_branch
    %51 = sbr.rel (0) target = $region61
  $region60: #{node_glam_forward.1} parent=0 // pred_region
    _
  $region61: #{node_glam_forward.1} parent=0 // pred_fallthru
    _
  // Predicated region
  $region62: #{node_glam_forward.1} parent=0 // pred_check
    _
  $region63: #{node_glam_forward.1} parent=0 // pred_check_branch
    %53 = sbr.rel (0) target = $region65
  $region64: #{node_glam_forward.1} parent=0 // pred_region
    _
  $region65: #{node_glam_forward.1} parent=0 // pred_fallthru
    _
  // Predicated region
  $region66: #{node_glam_forward.1} parent=0 // pred_check
    _
  $region67: #{node_glam_forward.1} parent=0 // pred_check_branch
    %55 = sbr.rel (0) target = $region69
  $region68: #{node_glam_forward.1} parent=0 // pred_region
    _
  $region69: #{node_glam_forward.1} parent=0 // pred_fallthru
    _
  %v57 = vld [vmem:[%s0] sm:$0xff]
  %v58 = vld [vmem:[%s0 + $0x8] sm:$0xff]
  %v59 = vld [vmem:[%s0 + $0x10] sm:$0xff]
  %v60 = vld [vmem:[%s0 + $0x18] sm:$0xff]
  %v61 = vld [vmem:[%s0 + $0x20] sm:$0xff]
  %v62 = vld [vmem:[%s0 + $0x28] sm:$0xff]
  %v63 = vld [vmem:[%s0 + $0x30] sm:$0xff]
  %v64 = vld [vmem:[%s0 + $0x38] sm:$0xff]
  %v65 = vld [vmem:[%s1] sm:$0xf]
  %v66 = vld [vmem:[%s1 + $0x4] sm:$0xf]
  %v67 = vld [vmem:[%s1 + $0x8] sm:$0xf]
  %v68 = vld [vmem:[%s1 + $0xc] sm:$0xf]
  %v69 = vld [vmem:[%s1 + $0x10] sm:$0xf]
  %v70 = vld [vmem:[%s1 + $0x14] sm:$0xf]
  %v71 = vld [vmem:[%s1 + $0x18] sm:$0xf]
  %v72 = vld [vmem:[%s1 + $0x1c] sm:$0xf]
  %vm73 = vcmask 130048
  %v74 = vsel %vm73, %v57, 0.0
  %v75 = vsel %vm73, %v58, 0.0
  %v76 = vadd.f32 %v74, %v75
  %v77 = vsel %vm73, %v59, 0.0
  %v78 = vadd.f32 %v76, %v77
  %v79 = vsel %vm73, %v60, 0.0
  %v80 = vadd.f32 %v78, %v79
  %v81 = vsel %vm73, %v61, 0.0
  %v82 = vadd.f32 %v80, %v81
  %v83 = vsel %vm73, %v62, 0.0
  %v84 = vadd.f32 %v82, %v83
  %v85 = vsel %vm73, %v63, 0.0
  %v86 = vadd.f32 %v84, %v85
  %v87 = vsel %vm73, %v64, 0.0
  %v88 = vadd.f32 %v86, %v87
  %v89 = vrot.slane %v88, 4
  %v90 = vadd.f32 %v88, %v89
  %v91 = vrot.slane %v90, 2
  %v92 = vadd.f32 %v90, %v91
  %v93 = vrot.slane %v92, 1
  %v94 = vadd.f32 %v92, %v93
  %v95 = vrcp.pop 64.0
  %v96 = vmul.f32 %v94, %v95
  %v97 = vmul.f32 %v57, %v57
  %v98 = vmul.f32 %v58, %v58
  %v99 = vmul.f32 %v59, %v59
  %v100 = vmul.f32 %v60, %v60
  %v101 = vmul.f32 %v61, %v61
  %v102 = vmul.f32 %v62, %v62
  %v103 = vmul.f32 %v63, %v63
  %v104 = vmul.f32 %v64, %v64
  %v105 = vsel %vm73, %v97, 0.0
  %v106 = vsel %vm73, %v98, 0.0
  %v107 = vadd.f32 %v105, %v106
  %v108 = vsel %vm73, %v99, 0.0
  %v109 = vadd.f32 %v107, %v108
  %v110 = vsel %vm73, %v100, 0.0
  %v111 = vadd.f32 %v109, %v110
  %v112 = vsel %vm73, %v101, 0.0
  %v113 = vadd.f32 %v111, %v112
  %v114 = vsel %vm73, %v102, 0.0
  %v115 = vadd.f32 %v113, %v114
  %v116 = vsel %vm73, %v103, 0.0
  %v117 = vadd.f32 %v115, %v116
  %v118 = vsel %vm73, %v104, 0.0
  %v119 = vadd.f32 %v117, %v118
  %v120 = vrot.slane %v119, 4
  %v121 = vadd.f32 %v119, %v120
  %v122 = vrot.slane %v121, 2
  %v123 = vadd.f32 %v121, %v122
  %v124 = vrot.slane %v123, 1
  %v125 = vadd.f32 %v123, %v124
  %v126 = vmul.f32 %v125, %v95
  %v127 = vmul.f32 %v96, %v96
  %v128 = vsub.f32 %v126, %v127
  %v129 = vsub.f32 %v57, %v96
  %v130 = vsub.f32 %v58, %v96
  %v131 = vsub.f32 %v59, %v96
  %v132 = vsub.f32 %v60, %v96
  %v133 = vsub.f32 %v61, %v96
  %v134 = vsub.f32 %v62, %v96
  %v135 = vsub.f32 %v63, %v96
  %v136 = vsub.f32 %v64, %v96
  %v137 = vadd.f32 %v128, 1e-05
  %v138 = vrsqrt.pop %v137
  %v139 = vmul.f32 %v129, %v138
  %v140 = vmul.f32 %v130, %v138
  %v141 = vmul.f32 %v131, %v138
  %v142 = vmul.f32 %v132, %v138
  %v143 = vmul.f32 %v133, %v138
  %v144 = vmul.f32 %v134, %v138
  %v145 = vmul.f32 %v135, %v138
  %v146 = vmul.f32 %v136, %v138
  %v147 = vld [vmem:[%s2] sm:$0x1]
  %v149 = vlaneseq
  %v150 = vshrl.u32 %v149, 7
  %v151 = vsub.s32 0, %v150
  %v152 = vrot.slane %v147, %v151
  %v154 = vmul.f32 %v139, %v152
  %v155 = vmul.f32 %v140, %v152
  %v156 = vmul.f32 %v141, %v152
  %v157 = vmul.f32 %v142, %v152
  %v158 = vmul.f32 %v143, %v152
  %v159 = vmul.f32 %v144, %v152
  %v160 = vmul.f32 %v145, %v152
  %v161 = vmul.f32 %v146, %v152
  %v162 = vld [vmem:[%s3] sm:$0x1]
  %v164 = vlaneseq
  %v165 = vshrl.u32 %v164, 7
  %v166 = vsub.s32 0, %v165
  %v167 = vrot.slane %v162, %v166
  %v169 = vadd.f32 %v154, %v167
  %v170 = vadd.f32 %v155, %v167
  %v171 = vadd.f32 %v156, %v167
  %v172 = vadd.f32 %v157, %v167
  %v173 = vadd.f32 %v158, %v167
  %v174 = vadd.f32 %v159, %v167
  %v175 = vadd.f32 %v160, %v167
  %v176 = vadd.f32 %v161, %v167
  %v177 = vpack.c.bf16 %v170, %v169
  %v178 = vpack.c.bf16 %v172, %v171
  %v179 = vpack.c.bf16 %v174, %v173
  %v180 = vpack.c.bf16 %v176, %v175
  %v181 = vld [vmem:[%s4] sm:$0xf]
  %v182 = vld [vmem:[%s4 + $0x4] sm:$0xf]
  %v183 = vld [vmem:[%s5] sm:$0x1]
  %v185 = vlaneseq
  %v186 = vshrl.u32 %v185, 7
  %v187 = vsub.s32 0, %v186
  %v188 = vrot.slane %v183, %v187
  %v192 = vunpack.c.l.b16 %v181
  %v193 = vunpack.c.l.b16 %v182
  %v194 = vpack.c.b16 %v193, %v192
  %v197 = vsel %vm73, %v177, 0
  %v200 = vsel %vm73, %v178, 0
  %v203 = vsel %vm73, %v179, 0
  %v206 = vsel %vm73, %v180, 0
  %208 = vmatprep.subr.bf16.mxu0 0
  %209 = vmatpush1.bf16.msra.mxu0 0
  %210 = vmatprep.subr.bf16.mxu0 0
  %211 = vmatpush1.bf16.msra.mxu0 0
  %212 = vmatprep.subr.bf16.mxu0 0
  %213 = vmatpush1.bf16.msra.mxu0 0
  %214 = vmatprep.subr.bf16.mxu0 0
  %215 = vmatpush1.bf16.msra.mxu0 0
  %216 = vmatprep.subr.bf16.mxu0 0
  %217 = vmatpush1.bf16.msra.mxu0 0
  %218 = vmatprep.subr.bf16.mxu0 0
  %219 = vmatpush1.bf16.msra.mxu0 0
  %220 = vmatprep.subr.bf16.mxu0 0
  %221 = vmatpush1.bf16.msra.mxu0 0
  %222 = vmatprep.subr.bf16.mxu0 0
  %223 = vmatpush1.bf16.msra.mxu0 %v194
  %224 = vmatprep.subr.bf16.mxu0 0
  %225 = vmatpush2.bf16.msra.mxu0 0
  %226 = vmatprep.subr.bf16.mxu0 0
  %227 = vmatpush2.bf16.msra.mxu0 0
  %228 = vmatprep.subr.bf16.mxu0 0
  %229 = vmatpush2.bf16.msra.mxu0 0
  %230 = vmatprep.subr.bf16.mxu0 0
  %231 = vmatpush2.bf16.msra.mxu0 0
  %232 = vmatprep.subr.bf16.mxu0 0
  %233 = vmatpush2.bf16.msra.mxu0 0
  %234 = vmatprep.subr.bf16.mxu0 0
  %235 = vmatpush2.bf16.msra.mxu0 0
  %236 = vmatprep.subr.bf16.mxu0 0
  %237 = vmatpush2.bf16.msra.mxu0 0
  %238 = vmatprep.subr.bf16.mxu0 0
  %239 = vmatpush2.bf16.msra.mxu0 0
  %240 = vmatprep.mubr.bf16.mxu0 0
  %241 = vmatmul.mubr.bf16.gmra.mxu0 %v197
  %v242 = vpop.f32.mrf.mxu0
  %v243 = vadd.f32 %v188, %v242
  %v244 = vpop.f32.mrf.mxu0
  %v245 = vpop.f32.mrf.mxu0
  %v246 = vadd.f32 %v188, %v245
  %v247 = vpop.f32.mrf.mxu0
  %248 = vmatprep.mubr.bf16.mxu0 0
  %249 = vmatmul.mubr.bf16.gmra.mxu0 %v200
  %v250 = vpop.f32.mrf.mxu0
  %v251 = vadd.f32 %v188, %v250
  %v252 = vpop.f32.mrf.mxu0
  %v253 = vpop.f32.mrf.mxu0
  %v254 = vadd.f32 %v188, %v253
  %v255 = vpop.f32.mrf.mxu0
  %256 = vmatprep.mubr.bf16.mxu0 0
  %257 = vmatmul.mubr.bf16.gmra.mxu0 %v203
  %v258 = vpop.f32.mrf.mxu0
  %v259 = vadd.f32 %v188, %v258
  %v260 = vpop.f32.mrf.mxu0
  %v261 = vpop.f32.mrf.mxu0
  %v262 = vadd.f32 %v188, %v261
  %v263 = vpop.f32.mrf.mxu0
  %264 = vmatprep.mubr.bf16.mxu0 0
  %265 = vmatmul.mubr.bf16.gmra.mxu0 %v206
  %v266 = vpop.f32.mrf.mxu0
  %v267 = vadd.f32 %v188, %v266
  %v268 = vpop.f32.mrf.mxu0
  %v269 = vpop.f32.mrf.mxu0
  %v270 = vadd.f32 %v188, %v269
  %v271 = vpop.f32.mrf.mxu0
  %272 = vdwg.mxu0
  %v273 = vmax.f32 %v243, 0.0
  %v274 = vmax.f32 %v246, 0.0
  %v275 = vmax.f32 %v251, 0.0
  %v276 = vmax.f32 %v254, 0.0
  %v277 = vmax.f32 %v259, 0.0
  %v278 = vmax.f32 %v262, 0.0
  %v279 = vmax.f32 %v267, 0.0
  %v280 = vmax.f32 %v270, 0.0
  %v281 = vpack.c.bf16 %v274, %v273
  %v282 = vpack.c.bf16 %v276, %v275
  %v283 = vpack.c.bf16 %v278, %v277
  %v284 = vpack.c.bf16 %v280, %v279
  %v293 = vunpack.c.l.b16 %v65
  %v294 = vunpack.c.l.b16 %v66
  %v295 = vunpack.c.l.b16 %v67
  %v296 = vunpack.c.l.b16 %v68
  %v297 = vunpack.c.l.b16 %v69
  %v298 = vunpack.c.l.b16 %v70
  %v299 = vunpack.c.l.b16 %v71
  %v300 = vunpack.c.l.b16 %v72
  %v301 = vpack.c.b16 %v294, %v293
  %v302 = vpack.c.b16 %v296, %v295
  %v303 = vpack.c.b16 %v298, %v297
  %v304 = vpack.c.b16 %v300, %v299
  %vm305 = vcmask 523264
  %v307 = vsel %vm305, %v301, 0
  %v310 = vsel %vm305, %v302, 0
  %v313 = vsel %vm305, %v303, 0
  %v316 = vsel %vm305, %v304, 0
  %318 = vmatprep.subr.bf16.mxu0 0
  %319 = vmatpush1.bf16.msra.mxu0 0
  %320 = vmatprep.subr.bf16.mxu0 0
  %321 = vmatpush1.bf16.msra.mxu0 0
  %322 = vmatprep.subr.bf16.mxu0 0
  %323 = vmatpush1.bf16.msra.mxu0 0
  %324 = vmatprep.subr.bf16.mxu0 0
  %325 = vmatpush1.bf16.msra.mxu0 0
  %326 = vmatprep.subr.bf16.mxu0 0
  %327 = vmatpush1.bf16.msra.mxu0 %v284
  %328 = vmatprep.subr.bf16.mxu0 0
  %329 = vmatpush1.bf16.msra.mxu0 %v283
  %330 = vmatprep.subr.bf16.mxu0 0
  %331 = vmatpush1.bf16.msra.mxu0 %v282
  %332 = vmatprep.subr.bf16.mxu0 0
  %333 = vmatpush1.bf16.msra.mxu0 %v281
  %334 = vmatprep.subr.bf16.mxu0 0
  %335 = vmatpush2.bf16.msra.mxu0 0
  %336 = vmatprep.subr.bf16.mxu0 0
  %337 = vmatpush2.bf16.msra.mxu0 0
  %338 = vmatprep.subr.bf16.mxu0 0
  %339 = vmatpush2.bf16.msra.mxu0 0
  %340 = vmatprep.subr.bf16.mxu0 0
  %341 = vmatpush2.bf16.msra.mxu0 0
  %342 = vmatprep.subr.bf16.mxu0 0
  %343 = vmatpush2.bf16.msra.mxu0 0
  %344 = vmatprep.subr.bf16.mxu0 0
  %345 = vmatpush2.bf16.msra.mxu0 0
  %346 = vmatprep.subr.bf16.mxu0 0
  %347 = vmatpush2.bf16.msra.mxu0 0
  %348 = vmatprep.subr.bf16.mxu0 0
  %349 = vmatpush2.bf16.msra.mxu0 0
  %350 = vmatprep.mubr.bf16.mxu0 0
  %351 = vmatmul.mubr.bf16.gmra.mxu0 %v307
  %v352 = vpop.f32.mrf.mxu0
  %v353 = vadd.f32 0.0, %v352
  %v354 = vpop.f32.mrf.mxu0
  %v355 = vpop.f32.mrf.mxu0
  %v356 = vadd.f32 0.0, %v355
  %v357 = vpop.f32.mrf.mxu0
  %358 = vmatprep.mubr.bf16.mxu0 0
  %359 = vmatmul.mubr.bf16.gmra.mxu0 %v310
  %v360 = vpop.f32.mrf.mxu0
  %v361 = vadd.f32 0.0, %v360
  %v362 = vpop.f32.mrf.mxu0
  %v363 = vpop.f32.mrf.mxu0
  %v364 = vadd.f32 0.0, %v363
  %v365 = vpop.f32.mrf.mxu0
  %366 = vmatprep.mubr.bf16.mxu0 0
  %367 = vmatmul.mubr.bf16.gmra.mxu0 %v313
  %v368 = vpop.f32.mrf.mxu0
  %v369 = vadd.f32 0.0, %v368
  %v370 = vpop.f32.mrf.mxu0
  %v371 = vpop.f32.mrf.mxu0
  %v372 = vadd.f32 0.0, %v371
  %v373 = vpop.f32.mrf.mxu0
  %374 = vmatprep.mubr.bf16.mxu0 0
  %375 = vmatmul.mubr.bf16.gmra.mxu0 %v316
  %v376 = vpop.f32.mrf.mxu0
  %v377 = vadd.f32 0.0, %v376
  %v378 = vpop.f32.mrf.mxu0
  %v379 = vpop.f32.mrf.mxu0
  %v380 = vadd.f32 0.0, %v379
  %v381 = vpop.f32.mrf.mxu0
  %382 = vdwg.mxu0
  %v383 = vpack.c.bf16 %v356, %v353
  %v384 = vpack.c.bf16 %v364, %v361
  %v385 = vpack.c.bf16 %v372, %v369
  %v386 = vpack.c.bf16 %v380, %v377
  %387 = vmatprep.subr.bf16.mxu0 0
  %388 = vmatpush1.bf16.msra.mxu0 0
  %389 = vmatprep.subr.bf16.mxu0 0
  %390 = vmatpush1.bf16.msra.mxu0 0
  %391 = vmatprep.subr.bf16.mxu0 0
  %392 = vmatpush1.bf16.msra.mxu0 0
  %393 = vmatprep.subr.bf16.mxu0 0
  %394 = vmatpush1.bf16.msra.mxu0 0
  %395 = vmatprep.subr.bf16.mxu0 0
  %396 = vmatpush1.bf16.msra.mxu0 %v386
  %397 = vmatprep.subr.bf16.mxu0 0
  %398 = vmatpush1.bf16.msra.mxu0 %v385
  %399 = vmatprep.subr.bf16.mxu0 0
  %400 = vmatpush1.bf16.msra.mxu0 %v384
  %401 = vmatprep.subr.bf16.mxu0 0
  %402 = vmatpush1.bf16.msra.mxu0 %v383
  %403 = vmatprep.subr.bf16.mxu0 0
  %404 = vmatpush2.bf16.msra.mxu0 0
  %405 = vmatprep.subr.bf16.mxu0 0
  %406 = vmatpush2.bf16.msra.mxu0 0
  %407 = vmatprep.subr.bf16.mxu0 0
  %408 = vmatpush2.bf16.msra.mxu0 0
  %409 = vmatprep.subr.bf16.mxu0 0
  %410 = vmatpush2.bf16.msra.mxu0 0
  %411 = vmatprep.subr.bf16.mxu0 0
  %412 = vmatpush2.bf16.msra.mxu0 0
  %413 = vmatprep.subr.bf16.mxu0 0
  %414 = vmatpush2.bf16.msra.mxu0 0
  %415 = vmatprep.subr.bf16.mxu0 0
  %416 = vmatpush2.bf16.msra.mxu0 0
  %417 = vmatprep.subr.bf16.mxu0 0
  %418 = vmatpush2.bf16.msra.mxu0 0
  %419 = vmatprep.mubr.bf16.mxu0 0
  %420 = vmatmul.mubr.bf16.gmra.mxu0 %v307
  %v421 = vpop.f32.mrf.mxu0
  %v422 = vadd.f32 0.0, %v421
  %v423 = vpop.f32.mrf.mxu0
  %v424 = vpop.f32.mrf.mxu0
  %v425 = vadd.f32 0.0, %v424
  %v426 = vpop.f32.mrf.mxu0
  %427 = vmatprep.mubr.bf16.mxu0 0
  %428 = vmatmul.mubr.bf16.gmra.mxu0 %v310
  %v429 = vpop.f32.mrf.mxu0
  %v430 = vadd.f32 0.0, %v429
  %v431 = vpop.f32.mrf.mxu0
  %v432 = vpop.f32.mrf.mxu0
  %v433 = vadd.f32 0.0, %v432
  %v434 = vpop.f32.mrf.mxu0
  %435 = vmatprep.mubr.bf16.mxu0 0
  %436 = vmatmul.mubr.bf16.gmra.mxu0 %v313
  %v437 = vpop.f32.mrf.mxu0
  %v438 = vadd.f32 0.0, %v437
  %v439 = vpop.f32.mrf.mxu0
  %v440 = vpop.f32.mrf.mxu0
  %v441 = vadd.f32 0.0, %v440
  %v442 = vpop.f32.mrf.mxu0
  %443 = vmatprep.mubr.bf16.mxu0 0
  %444 = vmatmul.mubr.bf16.gmra.mxu0 %v316
  %v445 = vpop.f32.mrf.mxu0
  %v446 = vadd.f32 0.0, %v445
  %v447 = vpop.f32.mrf.mxu0
  %v448 = vpop.f32.mrf.mxu0
  %v449 = vadd.f32 0.0, %v448
  %v450 = vpop.f32.mrf.mxu0
  %451 = vdwg.mxu0
  %v452 = vpack.c.bf16 %v425, %v422
  %v453 = vpack.c.bf16 %v433, %v430
  %v454 = vpack.c.bf16 %v441, %v438
  %v455 = vpack.c.bf16 %v449, %v446
  %456 = vmatprep.subr.bf16.mxu0 0
  %457 = vmatpush1.bf16.msra.mxu0 0
  %458 = vmatprep.subr.bf16.mxu0 0
  %459 = vmatpush1.bf16.msra.mxu0 0
  %460 = vmatprep.subr.bf16.mxu0 0
  %461 = vmatpush1.bf16.msra.mxu0 0
  %462 = vmatprep.subr.bf16.mxu0 0
  %463 = vmatpush1.bf16.msra.mxu0 0
  %464 = vmatprep.subr.bf16.mxu0 0
  %465 = vmatpush1.bf16.msra.mxu0 %v455
  %466 = vmatprep.subr.bf16.mxu0 0
  %467 = vmatpush1.bf16.msra.mxu0 %v454
  %468 = vmatprep.subr.bf16.mxu0 0
  %469 = vmatpush1.bf16.msra.mxu0 %v453
  %470 = vmatprep.subr.bf16.mxu0 0
  %471 = vmatpush1.bf16.msra.mxu0 %v452
  %472 = vmatprep.subr.bf16.mxu0 0
  %473 = vmatpush2.bf16.msra.mxu0 0
  %474 = vmatprep.subr.bf16.mxu0 0
  %475 = vmatpush2.bf16.msra.mxu0 0
  %476 = vmatprep.subr.bf16.mxu0 0
  %477 = vmatpush2.bf16.msra.mxu0 0
  %478 = vmatprep.subr.bf16.mxu0 0
  %479 = vmatpush2.bf16.msra.mxu0 0
  %480 = vmatprep.subr.bf16.mxu0 0
  %481 = vmatpush2.bf16.msra.mxu0 0
  %482 = vmatprep.subr.bf16.mxu0 0
  %483 = vmatpush2.bf16.msra.mxu0 0
  %484 = vmatprep.subr.bf16.mxu0 0
  %485 = vmatpush2.bf16.msra.mxu0 0
  %486 = vmatprep.subr.bf16.mxu0 0
  %487 = vmatpush2.bf16.msra.mxu0 0
  %488 = vmatprep.mubr.bf16.mxu0 0
  %489 = vmatmul.mubr.bf16.gmra.mxu0 %v307
  %v490 = vpop.f32.mrf.mxu0
  %v491 = vadd.f32 0.0, %v490
  %v492 = vpop.f32.mrf.mxu0
  %v493 = vpop.f32.mrf.mxu0
  %v494 = vadd.f32 0.0, %v493
  %v495 = vpop.f32.mrf.mxu0
  %496 = vmatprep.mubr.bf16.mxu0 0
  %497 = vmatmul.mubr.bf16.gmra.mxu0 %v310
  %v498 = vpop.f32.mrf.mxu0
  %v499 = vadd.f32 0.0, %v498
  %v500 = vpop.f32.mrf.mxu0
  %v501 = vpop.f32.mrf.mxu0
  %v502 = vadd.f32 0.0, %v501
  %v503 = vpop.f32.mrf.mxu0
  %504 = vmatprep.mubr.bf16.mxu0 0
  %505 = vmatmul.mubr.bf16.gmra.mxu0 %v313
  %v506 = vpop.f32.mrf.mxu0
  %v507 = vadd.f32 0.0, %v506
  %v508 = vpop.f32.mrf.mxu0
  %v509 = vpop.f32.mrf.mxu0
  %v510 = vadd.f32 0.0, %v509
  %v511 = vpop.f32.mrf.mxu0
  %512 = vmatprep.mubr.bf16.mxu0 0
  %513 = vmatmul.mubr.bf16.gmra.mxu0 %v316
  %v514 = vpop.f32.mrf.mxu0
  %v515 = vadd.f32 0.0, %v514
  %v516 = vpop.f32.mrf.mxu0
  %v517 = vpop.f32.mrf.mxu0
  %v518 = vadd.f32 0.0, %v517
  %v519 = vpop.f32.mrf.mxu0
  %520 = vdwg.mxu0
  %v521 = vpack.c.bf16 %v494, %v491
  %v522 = vpack.c.bf16 %v502, %v499
  %v523 = vpack.c.bf16 %v510, %v507
  %v524 = vpack.c.bf16 %v518, %v515
  %529 = vrot.lane.b32.xlu0 %v383, 32
  %v530 = vpop.permute.xlu0 %529
  %531 = vrot.lane.b32.xlu0 %v384, 32
  %v532 = vpop.permute.xlu0 %531
  %533 = vrot.lane.b32.xlu0 %v385, 32
  %v534 = vpop.permute.xlu0 %533
  %535 = vrot.lane.b32.xlu0 %v386, 32
  %v536 = vpop.permute.xlu0 %535
  %541 = vrot.lane.b32.xlu0 %v452, 64
  %v542 = vpop.permute.xlu0 %541
  %543 = vrot.lane.b32.xlu0 %v453, 64
  %v544 = vpop.permute.xlu0 %543
  %545 = vrot.lane.b32.xlu0 %v454, 64
  %v546 = vpop.permute.xlu0 %545
  %547 = vrot.lane.b32.xlu0 %v455, 64
  %v548 = vpop.permute.xlu0 %547
  %553 = vrot.lane.b32.xlu0 %v521, 96
  %v554 = vpop.permute.xlu0 %553
  %555 = vrot.lane.b32.xlu0 %v522, 96
  %v556 = vpop.permute.xlu0 %555
  %557 = vrot.lane.b32.xlu0 %v523, 96
  %v558 = vpop.permute.xlu0 %557
  %559 = vrot.lane.b32.xlu0 %v524, 96
  %v560 = vpop.permute.xlu0 %559
  %vm561 = vcmask 261120
  %v564 = vsel %vm561, %v281, %v530
  %v567 = vsel %vm561, %v282, %v532
  %v570 = vsel %vm561, %v283, %v534
  %v573 = vsel %vm561, %v284, %v536
  %v575 = vsel %vm305, %v564, %v542
  %v577 = vsel %vm305, %v567, %v544
  %v579 = vsel %vm305, %v570, %v546
  %v581 = vsel %vm305, %v573, %v548
  %vm582 = vcmask 785408
  %v584 = vsel %vm582, %v575, %v554
  %v587 = vsel %vm582, %v577, %v556
  %v590 = vsel %vm582, %v579, %v558
  %v593 = vsel %vm582, %v581, %v560
  %v595 = vld [vmem:[%s6] sm:$0xf]
  %v596 = vld [vmem:[%s6 + $0x4] sm:$0xf]
  %v597 = vld [vmem:[%s6 + $0x8] sm:$0xf]
  %v598 = vld [vmem:[%s6 + $0xc] sm:$0xf]
  %v599 = vld [vmem:[%s6 + $0x10] sm:$0xf]
  %v600 = vld [vmem:[%s6 + $0x14] sm:$0xf]
  %v601 = vld [vmem:[%s6 + $0x18] sm:$0xf]
  %v602 = vld [vmem:[%s6 + $0x1c] sm:$0xf]
  %v603 = vld [vmem:[%s6 + $0x20] sm:$0xf]
  %v604 = vld [vmem:[%s6 + $0x24] sm:$0xf]
  %v605 = vld [vmem:[%s6 + $0x28] sm:$0xf]
  %v606 = vld [vmem:[%s6 + $0x2c] sm:$0xf]
  %v607 = vld [vmem:[%s6 + $0x30] sm:$0xf]
  %v608 = vld [vmem:[%s6 + $0x34] sm:$0xf]
  %v609 = vld [vmem:[%s6 + $0x38] sm:$0xf]
  %v610 = vld [vmem:[%s6 + $0x3c] sm:$0xf]
  %v611 = vld [vmem:[%s7] sm:$0x1]
  %v613 = vlaneseq
  %v614 = vshrl.u32 %v613, 7
  %v615 = vsub.s32 0, %v614
  %v616 = vrot.slane %v611, %v615
  %v634 = vunpack.c.l.b16 %v595
  %v635 = vunpack.c.l.b16 %v596
  %v636 = vunpack.c.l.b16 %v597
  %v637 = vunpack.c.l.b16 %v598
  %v638 = vunpack.c.l.b16 %v599
  %v639 = vunpack.c.l.b16 %v600
  %v640 = vunpack.c.l.b16 %v601
  %v641 = vunpack.c.l.b16 %v602
  %v642 = vunpack.c.l.b16 %v603
  %v643 = vunpack.c.l.b16 %v604
  %v644 = vunpack.c.l.b16 %v605
  %v645 = vunpack.c.l.b16 %v606
  %v646 = vunpack.c.l.b16 %v607
  %v647 = vunpack.c.l.b16 %v608
  %v648 = vunpack.c.l.b16 %v609
  %v649 = vunpack.c.l.b16 %v610
  %v650 = vpack.c.b16 %v635, %v634
  %v651 = vpack.c.b16 %v637, %v636
  %v652 = vpack.c.b16 %v639, %v638
  %v653 = vpack.c.b16 %v641, %v640
  %v654 = vpack.c.b16 %v643, %v642
  %v655 = vpack.c.b16 %v645, %v644
  %v656 = vpack.c.b16 %v647, %v646
  %v657 = vpack.c.b16 %v649, %v648
  %666 = vmatprep.subr.bf16.mxu0 0
  %667 = vmatpush1.bf16.msra.mxu0 %v657
  %668 = vmatprep.subr.bf16.mxu0 0
  %669 = vmatpush1.bf16.msra.mxu0 %v656
  %670 = vmatprep.subr.bf16.mxu0 0
  %671 = vmatpush1.bf16.msra.mxu0 %v655
  %672 = vmatprep.subr.bf16.mxu0 0
  %673 = vmatpush1.bf16.msra.mxu0 %v654
  %674 = vmatprep.subr.bf16.mxu0 0
  %675 = vmatpush1.bf16.msra.mxu0 %v653
  %676 = vmatprep.subr.bf16.mxu0 0
  %677 = vmatpush1.bf16.msra.mxu0 %v652
  %678 = vmatprep.subr.bf16.mxu0 0
  %679 = vmatpush1.bf16.msra.mxu0 %v651
  %680 = vmatprep.subr.bf16.mxu0 0
  %681 = vmatpush1.bf16.msra.mxu0 %v650
  %682 = vmatprep.subr.bf16.mxu0 0
  %683 = vmatpush2.bf16.msra.mxu0 0
  %684 = vmatprep.subr.bf16.mxu0 0
  %685 = vmatpush2.bf16.msra.mxu0 0
  %686 = vmatprep.subr.bf16.mxu0 0
  %687 = vmatpush2.bf16.msra.mxu0 0
  %688 = vmatprep.subr.bf16.mxu0 0
  %689 = vmatpush2.bf16.msra.mxu0 0
  %690 = vmatprep.subr.bf16.mxu0 0
  %691 = vmatpush2.bf16.msra.mxu0 0
  %692 = vmatprep.subr.bf16.mxu0 0
  %693 = vmatpush2.bf16.msra.mxu0 0
  %694 = vmatprep.subr.bf16.mxu0 0
  %695 = vmatpush2.bf16.msra.mxu0 0
  %696 = vmatprep.subr.bf16.mxu0 0
  %697 = vmatpush2.bf16.msra.mxu0 0
  %698 = vmatprep.mubr.bf16.mxu0 0
  %699 = vmatmul.mubr.bf16.gmra.mxu0 %v584
  %v700 = vpop.f32.mrf.mxu0
  %v701 = vadd.f32 %v616, %v700
  %v702 = vpop.f32.mrf.mxu0
  %v703 = vpop.f32.mrf.mxu0
  %v704 = vadd.f32 %v616, %v703
  %v705 = vpop.f32.mrf.mxu0
  %706 = vmatprep.mubr.bf16.mxu0 0
  %707 = vmatmul.mubr.bf16.gmra.mxu0 %v587
  %v708 = vpop.f32.mrf.mxu0
  %v709 = vadd.f32 %v616, %v708
  %v710 = vpop.f32.mrf.mxu0
  %v711 = vpop.f32.mrf.mxu0
  %v712 = vadd.f32 %v616, %v711
  %v713 = vpop.f32.mrf.mxu0
  %714 = vmatprep.mubr.bf16.mxu0 0
  %715 = vmatmul.mubr.bf16.gmra.mxu0 %v590
  %v716 = vpop.f32.mrf.mxu0
  %v717 = vadd.f32 %v616, %v716
  %v718 = vpop.f32.mrf.mxu0
  %v719 = vpop.f32.mrf.mxu0
  %v720 = vadd.f32 %v616, %v719
  %v721 = vpop.f32.mrf.mxu0
  %722 = vmatprep.mubr.bf16.mxu0 0
  %723 = vmatmul.mubr.bf16.gmra.mxu0 %v593
  %v724 = vpop.f32.mrf.mxu0
  %v725 = vadd.f32 %v616, %v724
  %v726 = vpop.f32.mrf.mxu0
  %v727 = vpop.f32.mrf.mxu0
  %v728 = vadd.f32 %v616, %v727
  %v729 = vpop.f32.mrf.mxu0
  %730 = vdwg.mxu0
  %v731 = vmax.f32 %v701, 0.0
  %v732 = vmax.f32 %v704, 0.0
  %v733 = vmax.f32 %v709, 0.0
  %v734 = vmax.f32 %v712, 0.0
  %v735 = vmax.f32 %v717, 0.0
  %v736 = vmax.f32 %v720, 0.0
  %v737 = vmax.f32 %v725, 0.0
  %v738 = vmax.f32 %v728, 0.0
  %v739 = vpack.c.bf16 %v732, %v731
  %v740 = vpack.c.bf16 %v734, %v733
  %v741 = vpack.c.bf16 %v736, %v735
  %v742 = vpack.c.bf16 %v738, %v737
  %v743 = vld [vmem:[%s8] sm:$0xf]
  %v744 = vld [vmem:[%s8 + $0x4] sm:$0xf]
  %v745 = vld [vmem:[%s8 + $0x8] sm:$0xf]
  %v746 = vld [vmem:[%s8 + $0xc] sm:$0xf]
  %v747 = vld [vmem:[%s9] sm:$0x1]
  %v749 = vlaneseq
  %v750 = vshrl.u32 %v749, 7
  %v751 = vsub.s32 0, %v750
  %v752 = vrot.slane %v747, %v751
  %v758 = vunpack.c.l.b16 %v743
  %v759 = vunpack.c.l.b16 %v744
  %v760 = vunpack.c.l.b16 %v745
  %v761 = vunpack.c.l.b16 %v746
  %v762 = vpack.c.b16 %v759, %v758
  %v763 = vpack.c.b16 %v761, %v760
  %v767 = vsel %vm561, %v739, 0
  %v770 = vsel %vm561, %v740, 0
  %v773 = vsel %vm561, %v741, 0
  %v776 = vsel %vm561, %v742, 0
  %778 = vmatprep.subr.bf16.mxu0 0
  %779 = vmatpush1.bf16.msra.mxu0 0
  %780 = vmatprep.subr.bf16.mxu0 0
  %781 = vmatpush1.bf16.msra.mxu0 0
  %782 = vmatprep.subr.bf16.mxu0 0
  %783 = vmatpush1.bf16.msra.mxu0 0
  %784 = vmatprep.subr.bf16.mxu0 0
  %785 = vmatpush1.bf16.msra.mxu0 0
  %786 = vmatprep.subr.bf16.mxu0 0
  %787 = vmatpush1.bf16.msra.mxu0 0
  %788 = vmatprep.subr.bf16.mxu0 0
  %789 = vmatpush1.bf16.msra.mxu0 0
  %790 = vmatprep.subr.bf16.mxu0 0
  %791 = vmatpush1.bf16.msra.mxu0 %v763
  %792 = vmatprep.subr.bf16.mxu0 0
  %793 = vmatpush1.bf16.msra.mxu0 %v762
  %794 = vmatprep.subr.bf16.mxu0 0
  %795 = vmatpush2.bf16.msra.mxu0 0
  %796 = vmatprep.subr.bf16.mxu0 0
  %797 = vmatpush2.bf16.msra.mxu0 0
  %798 = vmatprep.subr.bf16.mxu0 0
  %799 = vmatpush2.bf16.msra.mxu0 0
  %800 = vmatprep.subr.bf16.mxu0 0
  %801 = vmatpush2.bf16.msra.mxu0 0
  %802 = vmatprep.subr.bf16.mxu0 0
  %803 = vmatpush2.bf16.msra.mxu0 0
  %804 = vmatprep.subr.bf16.mxu0 0
  %805 = vmatpush2.bf16.msra.mxu0 0
  %806 = vmatprep.subr.bf16.mxu0 0
  %807 = vmatpush2.bf16.msra.mxu0 0
  %808 = vmatprep.subr.bf16.mxu0 0
  %809 = vmatpush2.bf16.msra.mxu0 0
  %810 = vmatprep.mubr.bf16.mxu0 0
  %811 = vmatmul.mubr.bf16.gmra.mxu0 %v767
  %v812 = vpop.f32.mrf.mxu0
  %v813 = vadd.f32 %v752, %v812
  %v814 = vpop.f32.mrf.mxu0
  %v815 = vpop.f32.mrf.mxu0
  %v816 = vadd.f32 %v752, %v815
  %v817 = vpop.f32.mrf.mxu0
  %818 = vmatprep.mubr.bf16.mxu0 0
  %819 = vmatmul.mubr.bf16.gmra.mxu0 %v770
  %v820 = vpop.f32.mrf.mxu0
  %v821 = vadd.f32 %v752, %v820
  %v822 = vpop.f32.mrf.mxu0
  %v823 = vpop.f32.mrf.mxu0
  %v824 = vadd.f32 %v752, %v823
  %v825 = vpop.f32.mrf.mxu0
  %826 = vmatprep.mubr.bf16.mxu0 0
  %827 = vmatmul.mubr.bf16.gmra.mxu0 %v773
  %v828 = vpop.f32.mrf.mxu0
  %v829 = vadd.f32 %v752, %v828
  %v830 = vpop.f32.mrf.mxu0
  %v831 = vpop.f32.mrf.mxu0
  %v832 = vadd.f32 %v752, %v831
  %v833 = vpop.f32.mrf.mxu0
  %834 = vmatprep.mubr.bf16.mxu0 0
  %835 = vmatmul.mubr.bf16.gmra.mxu0 %v776
  %v836 = vpop.f32.mrf.mxu0
  %v837 = vadd.f32 %v752, %v836
  %v838 = vpop.f32.mrf.mxu0
  %v839 = vpop.f32.mrf.mxu0
  %v840 = vadd.f32 %v752, %v839
  %v841 = vpop.f32.mrf.mxu0
  %842 = vdwg.mxu0
  %v843 = vmax.f32 %v813, 0.0
  %v844 = vmax.f32 %v816, 0.0
  %v845 = vmax.f32 %v821, 0.0
  %v846 = vmax.f32 %v824, 0.0
  %v847 = vmax.f32 %v829, 0.0
  %v848 = vmax.f32 %v832, 0.0
  %v849 = vmax.f32 %v837, 0.0
  %v850 = vmax.f32 %v840, 0.0
  %v851 = vpack.c.bf16 %v844, %v843
  %v852 = vpack.c.bf16 %v846, %v845
  %v853 = vpack.c.bf16 %v848, %v847
  %v854 = vpack.c.bf16 %v850, %v849
  %855 = vmatprep.subr.bf16.mxu0 0
  %856 = vmatpush1.bf16.msra.mxu0 0
  %857 = vmatprep.subr.bf16.mxu0 0
  %858 = vmatpush1.bf16.msra.mxu0 0
  %859 = vmatprep.subr.bf16.mxu0 0
  %860 = vmatpush1.bf16.msra.mxu0 0
  %861 = vmatprep.subr.bf16.mxu0 0
  %862 = vmatpush1.bf16.msra.mxu0 0
  %863 = vmatprep.subr.bf16.mxu0 0
  %864 = vmatpush1.bf16.msra.mxu0 %v854
  %865 = vmatprep.subr.bf16.mxu0 0
  %866 = vmatpush1.bf16.msra.mxu0 %v853
  %867 = vmatprep.subr.bf16.mxu0 0
  %868 = vmatpush1.bf16.msra.mxu0 %v852
  %869 = vmatprep.subr.bf16.mxu0 0
  %870 = vmatpush1.bf16.msra.mxu0 %v851
  %871 = vmatprep.subr.bf16.mxu0 0
  %872 = vmatpush2.bf16.msra.mxu0 0
  %873 = vmatprep.subr.bf16.mxu0 0
  %874 = vmatpush2.bf16.msra.mxu0 0
  %875 = vmatprep.subr.bf16.mxu0 0
  %876 = vmatpush2.bf16.msra.mxu0 0
  %877 = vmatprep.subr.bf16.mxu0 0
  %878 = vmatpush2.bf16.msra.mxu0 0
  %879 = vmatprep.subr.bf16.mxu0 0
  %880 = vmatpush2.bf16.msra.mxu0 0
  %881 = vmatprep.subr.bf16.mxu0 0
  %882 = vmatpush2.bf16.msra.mxu0 0
  %883 = vmatprep.subr.bf16.mxu0 0
  %884 = vmatpush2.bf16.msra.mxu0 0
  %885 = vmatprep.subr.bf16.mxu0 0
  %886 = vmatpush2.bf16.msra.mxu0 0
  %887 = vmatprep.mubr.bf16.mxu0 0
  %888 = vmatmul.mubr.bf16.gmra.mxu0 %v307
  %v889 = vpop.f32.mrf.mxu0
  %v890 = vadd.f32 0.0, %v889
  %v891 = vpop.f32.mrf.mxu0
  %v892 = vpop.f32.mrf.mxu0
  %v893 = vadd.f32 0.0, %v892
  %v894 = vpop.f32.mrf.mxu0
  %895 = vmatprep.mubr.bf16.mxu0 0
  %896 = vmatmul.mubr.bf16.gmra.mxu0 %v310
  %v897 = vpop.f32.mrf.mxu0
  %v898 = vadd.f32 0.0, %v897
  %v899 = vpop.f32.mrf.mxu0
  %v900 = vpop.f32.mrf.mxu0
  %v901 = vadd.f32 0.0, %v900
  %v902 = vpop.f32.mrf.mxu0
  %903 = vmatprep.mubr.bf16.mxu0 0
  %904 = vmatmul.mubr.bf16.gmra.mxu0 %v313
  %v905 = vpop.f32.mrf.mxu0
  %v906 = vadd.f32 0.0, %v905
  %v907 = vpop.f32.mrf.mxu0
  %v908 = vpop.f32.mrf.mxu0
  %v909 = vadd.f32 0.0, %v908
  %v910 = vpop.f32.mrf.mxu0
  %911 = vmatprep.mubr.bf16.mxu0 0
  %912 = vmatmul.mubr.bf16.gmra.mxu0 %v316
  %v913 = vpop.f32.mrf.mxu0
  %v914 = vadd.f32 0.0, %v913
  %v915 = vpop.f32.mrf.mxu0
  %v916 = vpop.f32.mrf.mxu0
  %v917 = vadd.f32 0.0, %v916
  %v918 = vpop.f32.mrf.mxu0
  %919 = vdwg.mxu0
  %v920 = vpack.c.bf16 %v893, %v890
  %v921 = vpack.c.bf16 %v901, %v898
  %v922 = vpack.c.bf16 %v909, %v906
  %v923 = vpack.c.bf16 %v917, %v914
  %924 = vmatprep.subr.bf16.mxu0 0
  %925 = vmatpush1.bf16.msra.mxu0 0
  %926 = vmatprep.subr.bf16.mxu0 0
  %927 = vmatpush1.bf16.msra.mxu0 0
  %928 = vmatprep.subr.bf16.mxu0 0
  %929 = vmatpush1.bf16.msra.mxu0 0
  %930 = vmatprep.subr.bf16.mxu0 0
  %931 = vmatpush1.bf16.msra.mxu0 0
  %932 = vmatprep.subr.bf16.mxu0 0
  %933 = vmatpush1.bf16.msra.mxu0 %v923
  %934 = vmatprep.subr.bf16.mxu0 0
  %935 = vmatpush1.bf16.msra.mxu0 %v922
  %936 = vmatprep.subr.bf16.mxu0 0
  %937 = vmatpush1.bf16.msra.mxu0 %v921
  %938 = vmatprep.subr.bf16.mxu0 0
  %939 = vmatpush1.bf16.msra.mxu0 %v920
  %940 = vmatprep.subr.bf16.mxu0 0
  %941 = vmatpush2.bf16.msra.mxu0 0
  %942 = vmatprep.subr.bf16.mxu0 0
  %943 = vmatpush2.bf16.msra.mxu0 0
  %944 = vmatprep.subr.bf16.mxu0 0
  %945 = vmatpush2.bf16.msra.mxu0 0
  %946 = vmatprep.subr.bf16.mxu0 0
  %947 = vmatpush2.bf16.msra.mxu0 0
  %948 = vmatprep.subr.bf16.mxu0 0
  %949 = vmatpush2.bf16.msra.mxu0 0
  %950 = vmatprep.subr.bf16.mxu0 0
  %951 = vmatpush2.bf16.msra.mxu0 0
  %952 = vmatprep.subr.bf16.mxu0 0
  %953 = vmatpush2.bf16.msra.mxu0 0
  %954 = vmatprep.subr.bf16.mxu0 0
  %955 = vmatpush2.bf16.msra.mxu0 0
  %956 = vmatprep.mubr.bf16.mxu0 0
  %957 = vmatmul.mubr.bf16.gmra.mxu0 %v307
  %v958 = vpop.f32.mrf.mxu0
  %v959 = vadd.f32 0.0, %v958
  %v960 = vpop.f32.mrf.mxu0
  %v961 = vpop.f32.mrf.mxu0
  %v962 = vadd.f32 0.0, %v961
  %v963 = vpop.f32.mrf.mxu0
  %964 = vmatprep.mubr.bf16.mxu0 0
  %965 = vmatmul.mubr.bf16.gmra.mxu0 %v310
  %v966 = vpop.f32.mrf.mxu0
  %v967 = vadd.f32 0.0, %v966
  %v968 = vpop.f32.mrf.mxu0
  %v969 = vpop.f32.mrf.mxu0
  %v970 = vadd.f32 0.0, %v969
  %v971 = vpop.f32.mrf.mxu0
  %972 = vmatprep.mubr.bf16.mxu0 0
  %973 = vmatmul.mubr.bf16.gmra.mxu0 %v313
  %v974 = vpop.f32.mrf.mxu0
  %v975 = vadd.f32 0.0, %v974
  %v976 = vpop.f32.mrf.mxu0
  %v977 = vpop.f32.mrf.mxu0
  %v978 = vadd.f32 0.0, %v977
  %v979 = vpop.f32.mrf.mxu0
  %980 = vmatprep.mubr.bf16.mxu0 0
  %981 = vmatmul.mubr.bf16.gmra.mxu0 %v316
  %v982 = vpop.f32.mrf.mxu0
  %v983 = vadd.f32 0.0, %v982
  %v984 = vpop.f32.mrf.mxu0
  %v985 = vpop.f32.mrf.mxu0
  %v986 = vadd.f32 0.0, %v985
  %v987 = vpop.f32.mrf.mxu0
  %988 = vdwg.mxu0
  %v989 = vpack.c.bf16 %v962, %v959
  %v990 = vpack.c.bf16 %v970, %v967
  %v991 = vpack.c.bf16 %v978, %v975
  %v992 = vpack.c.bf16 %v986, %v983
  %993 = vmatprep.subr.bf16.mxu0 0
  %994 = vmatpush1.bf16.msra.mxu0 0
  %995 = vmatprep.subr.bf16.mxu0 0
  %996 = vmatpush1.bf16.msra.mxu0 0
  %997 = vmatprep.subr.bf16.mxu0 0
  %998 = vmatpush1.bf16.msra.mxu0 0
  %999 = vmatprep.subr.bf16.mxu0 0
  %1000 = vmatpush1.bf16.msra.mxu0 0
  %1001 = vmatprep.subr.bf16.mxu0 0
  %1002 = vmatpush1.bf16.msra.mxu0 %v992
  %1003 = vmatprep.subr.bf16.mxu0 0
  %1004 = vmatpush1.bf16.msra.mxu0 %v991
  %1005 = vmatprep.subr.bf16.mxu0 0
  %1006 = vmatpush1.bf16.msra.mxu0 %v990
  %1007 = vmatprep.subr.bf16.mxu0 0
  %1008 = vmatpush1.bf16.msra.mxu0 %v989
  %1009 = vmatprep.subr.bf16.mxu0 0
  %1010 = vmatpush2.bf16.msra.mxu0 0
  %1011 = vmatprep.subr.bf16.mxu0 0
  %1012 = vmatpush2.bf16.msra.mxu0 0
  %1013 = vmatprep.subr.bf16.mxu0 0
  %1014 = vmatpush2.bf16.msra.mxu0 0
  %1015 = vmatprep.subr.bf16.mxu0 0
  %1016 = vmatpush2.bf16.msra.mxu0 0
  %1017 = vmatprep.subr.bf16.mxu0 0
  %1018 = vmatpush2.bf16.msra.mxu0 0
  %1019 = vmatprep.subr.bf16.mxu0 0
  %1020 = vmatpush2.bf16.msra.mxu0 0
  %1021 = vmatprep.subr.bf16.mxu0 0
  %1022 = vmatpush2.bf16.msra.mxu0 0
  %1023 = vmatprep.subr.bf16.mxu0 0
  %1024 = vmatpush2.bf16.msra.mxu0 0
  %1025 = vmatprep.mubr.bf16.mxu0 0
  %1026 = vmatmul.mubr.bf16.gmra.mxu0 %v307
  %v1027 = vpop.f32.mrf.mxu0
  %v1028 = vadd.f32 0.0, %v1027
  %v1029 = vpop.f32.mrf.mxu0
  %v1030 = vpop.f32.mrf.mxu0
  %v1031 = vadd.f32 0.0, %v1030
  %v1032 = vpop.f32.mrf.mxu0
  %1033 = vmatprep.mubr.bf16.mxu0 0
  %1034 = vmatmul.mubr.bf16.gmra.mxu0 %v310
  %v1035 = vpop.f32.mrf.mxu0
  %v1036 = vadd.f32 0.0, %v1035
  %v1037 = vpop.f32.mrf.mxu0
  %v1038 = vpop.f32.mrf.mxu0
  %v1039 = vadd.f32 0.0, %v1038
  %v1040 = vpop.f32.mrf.mxu0
  %1041 = vmatprep.mubr.bf16.mxu0 0
  %1042 = vmatmul.mubr.bf16.gmra.mxu0 %v313
  %v1043 = vpop.f32.mrf.mxu0
  %v1044 = vadd.f32 0.0, %v1043
  %v1045 = vpop.f32.mrf.mxu0
  %v1046 = vpop.f32.mrf.mxu0
  %v1047 = vadd.f32 0.0, %v1046
  %v1048 = vpop.f32.mrf.mxu0
  %1049 = vmatprep.mubr.bf16.mxu0 0
  %1050 = vmatmul.mubr.bf16.gmra.mxu0 %v316
  %v1051 = vpop.f32.mrf.mxu0
  %v1052 = vadd.f32 0.0, %v1051
  %v1053 = vpop.f32.mrf.mxu0
  %v1054 = vpop.f32.mrf.mxu0
  %v1055 = vadd.f32 0.0, %v1054
  %v1056 = vpop.f32.mrf.mxu0
  %1057 = vdwg.mxu0
  %v1058 = vpack.c.bf16 %v1031, %v1028
  %v1059 = vpack.c.bf16 %v1039, %v1036
  %v1060 = vpack.c.bf16 %v1047, %v1044
  %v1061 = vpack.c.bf16 %v1055, %v1052
  %1066 = vrot.lane.b32.xlu0 %v920, 32
  %v1067 = vpop.permute.xlu0 %1066
  %1068 = vrot.lane.b32.xlu0 %v921, 32
  %v1069 = vpop.permute.xlu0 %1068
  %1070 = vrot.lane.b32.xlu0 %v922, 32
  %v1071 = vpop.permute.xlu0 %1070
  %1072 = vrot.lane.b32.xlu0 %v923, 32
  %v1073 = vpop.permute.xlu0 %1072
  %1078 = vrot.lane.b32.xlu0 %v989, 64
  %v1079 = vpop.permute.xlu0 %1078
  %1080 = vrot.lane.b32.xlu0 %v990, 64
  %v1081 = vpop.permute.xlu0 %1080
  %1082 = vrot.lane.b32.xlu0 %v991, 64
  %v1083 = vpop.permute.xlu0 %1082
  %1084 = vrot.lane.b32.xlu0 %v992, 64
  %v1085 = vpop.permute.xlu0 %1084
  %1090 = vrot.lane.b32.xlu0 %v1058, 96
  %v1091 = vpop.permute.xlu0 %1090
  %1092 = vrot.lane.b32.xlu0 %v1059, 96
  %v1093 = vpop.permute.xlu0 %1092
  %1094 = vrot.lane.b32.xlu0 %v1060, 96
  %v1095 = vpop.permute.xlu0 %1094
  %1096 = vrot.lane.b32.xlu0 %v1061, 96
  %v1097 = vpop.permute.xlu0 %1096
  %v1100 = vsel %vm561, %v851, %v1067
  %v1103 = vsel %vm561, %v852, %v1069
  %v1106 = vsel %vm561, %v853, %v1071
  %v1109 = vsel %vm561, %v854, %v1073
  %v1111 = vsel %vm305, %v1100, %v1079
  %v1113 = vsel %vm305, %v1103, %v1081
  %v1115 = vsel %vm305, %v1106, %v1083
  %v1117 = vsel %vm305, %v1109, %v1085
  %v1119 = vsel %vm582, %v1111, %v1091
  %v1122 = vsel %vm582, %v1113, %v1093
  %v1125 = vsel %vm582, %v1115, %v1095
  %v1128 = vsel %vm582, %v1117, %v1097
  %v1130 = vld [vmem:[%s10] sm:$0xf]
  %v1131 = vld [vmem:[%s10 + $0x4] sm:$0xf]
  %v1132 = vld [vmem:[%s10 + $0x8] sm:$0xf]
  %v1133 = vld [vmem:[%s10 + $0xc] sm:$0xf]
  %v1134 = vld [vmem:[%s10 + $0x10] sm:$0xf]
  %v1135 = vld [vmem:[%s10 + $0x14] sm:$0xf]
  %v1136 = vld [vmem:[%s10 + $0x18] sm:$0xf]
  %v1137 = vld [vmem:[%s10 + $0x1c] sm:$0xf]
  %v1138 = vld [vmem:[%s10 + $0x20] sm:$0xf]
  %v1139 = vld [vmem:[%s10 + $0x24] sm:$0xf]
  %v1140 = vld [vmem:[%s10 + $0x28] sm:$0xf]
  %v1141 = vld [vmem:[%s10 + $0x2c] sm:$0xf]
  %v1142 = vld [vmem:[%s10 + $0x30] sm:$0xf]
  %v1143 = vld [vmem:[%s10 + $0x34] sm:$0xf]
  %v1144 = vld [vmem:[%s10 + $0x38] sm:$0xf]
  %v1145 = vld [vmem:[%s10 + $0x3c] sm:$0xf]
  %v1146 = vld [vmem:[%s11] sm:$0x1]
  %v1148 = vlaneseq
  %v1149 = vshrl.u32 %v1148, 7
  %v1150 = vsub.s32 0, %v1149
  %v1151 = vrot.slane %v1146, %v1150
  %v1169 = vunpack.c.l.b16 %v1130
  %v1170 = vunpack.c.l.b16 %v1131
  %v1171 = vunpack.c.l.b16 %v1132
  %v1172 = vunpack.c.l.b16 %v1133
  %v1173 = vunpack.c.l.b16 %v1134
  %v1174 = vunpack.c.l.b16 %v1135
  %v1175 = vunpack.c.l.b16 %v1136
  %v1176 = vunpack.c.l.b16 %v1137
  %v1177 = vunpack.c.l.b16 %v1138
  %v1178 = vunpack.c.l.b16 %v1139
  %v1179 = vunpack.c.l.b16 %v1140
  %v1180 = vunpack.c.l.b16 %v1141
  %v1181 = vunpack.c.l.b16 %v1142
  %v1182 = vunpack.c.l.b16 %v1143
  %v1183 = vunpack.c.l.b16 %v1144
  %v1184 = vunpack.c.l.b16 %v1145
  %v1185 = vpack.c.b16 %v1170, %v1169
  %v1186 = vpack.c.b16 %v1172, %v1171
  %v1187 = vpack.c.b16 %v1174, %v1173
  %v1188 = vpack.c.b16 %v1176, %v1175
  %v1189 = vpack.c.b16 %v1178, %v1177
  %v1190 = vpack.c.b16 %v1180, %v1179
  %v1191 = vpack.c.b16 %v1182, %v1181
  %v1192 = vpack.c.b16 %v1184, %v1183
  %1201 = vmatprep.subr.bf16.mxu0 0
  %1202 = vmatpush1.bf16.msra.mxu0 %v1192
  %1203 = vmatprep.subr.bf16.mxu0 0
  %1204 = vmatpush1.bf16.msra.mxu0 %v1191
  %1205 = vmatprep.subr.bf16.mxu0 0
  %1206 = vmatpush1.bf16.msra.mxu0 %v1190
  %1207 = vmatprep.subr.bf16.mxu0 0
  %1208 = vmatpush1.bf16.msra.mxu0 %v1189
  %1209 = vmatprep.subr.bf16.mxu0 0
  %1210 = vmatpush1.bf16.msra.mxu0 %v1188
  %1211 = vmatprep.subr.bf16.mxu0 0
  %1212 = vmatpush1.bf16.msra.mxu0 %v1187
  %1213 = vmatprep.subr.bf16.mxu0 0
  %1214 = vmatpush1.bf16.msra.mxu0 %v1186
  %1215 = vmatprep.subr.bf16.mxu0 0
  %1216 = vmatpush1.bf16.msra.mxu0 %v1185
  %1217 = vmatprep.subr.bf16.mxu0 0
  %1218 = vmatpush2.bf16.msra.mxu0 0
  %1219 = vmatprep.subr.bf16.mxu0 0
  %1220 = vmatpush2.bf16.msra.mxu0 0
  %1221 = vmatprep.subr.bf16.mxu0 0
  %1222 = vmatpush2.bf16.msra.mxu0 0
  %1223 = vmatprep.subr.bf16.mxu0 0
  %1224 = vmatpush2.bf16.msra.mxu0 0
  %1225 = vmatprep.subr.bf16.mxu0 0
  %1226 = vmatpush2.bf16.msra.mxu0 0
  %1227 = vmatprep.subr.bf16.mxu0 0
  %1228 = vmatpush2.bf16.msra.mxu0 0
  %1229 = vmatprep.subr.bf16.mxu0 0
  %1230 = vmatpush2.bf16.msra.mxu0 0
  %1231 = vmatprep.subr.bf16.mxu0 0
  %1232 = vmatpush2.bf16.msra.mxu0 0
  %1233 = vmatprep.mubr.bf16.mxu0 0
  %1234 = vmatmul.mubr.bf16.gmra.mxu0 %v1119
  %v1235 = vpop.f32.mrf.mxu0
  %v1236 = vadd.f32 %v1151, %v1235
  %v1237 = vpop.f32.mrf.mxu0
  %v1238 = vpop.f32.mrf.mxu0
  %v1239 = vadd.f32 %v1151, %v1238
  %v1240 = vpop.f32.mrf.mxu0
  %1241 = vmatprep.mubr.bf16.mxu0 0
  %1242 = vmatmul.mubr.bf16.gmra.mxu0 %v1122
  %v1243 = vpop.f32.mrf.mxu0
  %v1244 = vadd.f32 %v1151, %v1243
  %v1245 = vpop.f32.mrf.mxu0
  %v1246 = vpop.f32.mrf.mxu0
  %v1247 = vadd.f32 %v1151, %v1246
  %v1248 = vpop.f32.mrf.mxu0
  %1249 = vmatprep.mubr.bf16.mxu0 0
  %1250 = vmatmul.mubr.bf16.gmra.mxu0 %v1125
  %v1251 = vpop.f32.mrf.mxu0
  %v1252 = vadd.f32 %v1151, %v1251
  %v1253 = vpop.f32.mrf.mxu0
  %v1254 = vpop.f32.mrf.mxu0
  %v1255 = vadd.f32 %v1151, %v1254
  %v1256 = vpop.f32.mrf.mxu0
  %1257 = vmatprep.mubr.bf16.mxu0 0
  %1258 = vmatmul.mubr.bf16.gmra.mxu0 %v1128
  %v1259 = vpop.f32.mrf.mxu0
  %v1260 = vadd.f32 %v1151, %v1259
  %v1261 = vpop.f32.mrf.mxu0
  %v1262 = vpop.f32.mrf.mxu0
  %v1263 = vadd.f32 %v1151, %v1262
  %v1264 = vpop.f32.mrf.mxu0
  %1265 = vdwg.mxu0
  %v1266 = vmax.f32 %v1236, 0.0
  %v1267 = vmax.f32 %v1239, 0.0
  %v1268 = vmax.f32 %v1244, 0.0
  %v1269 = vmax.f32 %v1247, 0.0
  %v1270 = vmax.f32 %v1252, 0.0
  %v1271 = vmax.f32 %v1255, 0.0
  %v1272 = vmax.f32 %v1260, 0.0
  %v1273 = vmax.f32 %v1263, 0.0
  %v1274 = vld [vmem:[%s12] sm:$0xf]
  %v1275 = vld [vmem:[%s12 + $0x4] sm:$0xf]
  %v1276 = vpack.c.bf16 %v1267, %v1266
  %v1277 = vpack.c.bf16 %v1269, %v1268
  %v1278 = vpack.c.bf16 %v1271, %v1270
  %v1279 = vpack.c.bf16 %v1273, %v1272
  %v1280 = vld [vmem:[%s13] sm:$0xf]
  %v1281 = vld [vmem:[%s13 + $0x4] sm:$0xf]
  %v1282 = vld [vmem:[%s13 + $0x8] sm:$0xf]
  %v1283 = vld [vmem:[%s13 + $0xc] sm:$0xf]
  %v1288 = vunpack.c.l.b16 %v1280
  %v1289 = vunpack.c.l.b16 %v1281
  %v1290 = vunpack.c.l.b16 %v1282
  %v1291 = vunpack.c.l.b16 %v1283
  %v1292 = vpack.c.b16 %v1289, %v1288
  %v1293 = vpack.c.b16 %v1291, %v1290
  %v1297 = vsel %vm561, %v1276, 0
  %v1300 = vsel %vm561, %v1277, 0
  %v1303 = vsel %vm561, %v1278, 0
  %v1306 = vsel %vm561, %v1279, 0
  %1308 = vmatprep.subr.bf16.mxu0 0
  %1309 = vmatpush1.bf16.msra.mxu0 0
  %1310 = vmatprep.subr.bf16.mxu0 0
  %1311 = vmatpush1.bf16.msra.mxu0 0
  %1312 = vmatprep.subr.bf16.mxu0 0
  %1313 = vmatpush1.bf16.msra.mxu0 0
  %1314 = vmatprep.subr.bf16.mxu0 0
  %1315 = vmatpush1.bf16.msra.mxu0 0
  %1316 = vmatprep.subr.bf16.mxu0 0
  %1317 = vmatpush1.bf16.msra.mxu0 0
  %1318 = vmatprep.subr.bf16.mxu0 0
  %1319 = vmatpush1.bf16.msra.mxu0 0
  %1320 = vmatprep.subr.bf16.mxu0 0
  %1321 = vmatpush1.bf16.msra.mxu0 %v1293
  %1322 = vmatprep.subr.bf16.mxu0 0
  %1323 = vmatpush1.bf16.msra.mxu0 %v1292
  %1324 = vmatprep.subr.bf16.mxu0 0
  %1325 = vmatpush2.bf16.msra.mxu0 0
  %1326 = vmatprep.subr.bf16.mxu0 0
  %1327 = vmatpush2.bf16.msra.mxu0 0
  %1328 = vmatprep.subr.bf16.mxu0 0
  %1329 = vmatpush2.bf16.msra.mxu0 0
  %1330 = vmatprep.subr.bf16.mxu0 0
  %1331 = vmatpush2.bf16.msra.mxu0 0
  %1332 = vmatprep.subr.bf16.mxu0 0
  %1333 = vmatpush2.bf16.msra.mxu0 0
  %1334 = vmatprep.subr.bf16.mxu0 0
  %1335 = vmatpush2.bf16.msra.mxu0 0
  %1336 = vmatprep.subr.bf16.mxu0 0
  %1337 = vmatpush2.bf16.msra.mxu0 0
  %1338 = vmatprep.subr.bf16.mxu0 0
  %1339 = vmatpush2.bf16.msra.mxu0 0
  %1340 = vmatprep.mubr.bf16.mxu0 0
  %1341 = vmatmul.mubr.bf16.gmra.mxu0 %v1297
  %v1342 = vpop.f32.mrf.mxu0
  %v1343 = vadd.f32 0.0, %v1342
  %v1344 = vpop.f32.mrf.mxu0
  %v1345 = vpop.f32.mrf.mxu0
  %v1346 = vadd.f32 0.0, %v1345
  %v1347 = vpop.f32.mrf.mxu0
  %1348 = vmatprep.mubr.bf16.mxu0 0
  %1349 = vmatmul.mubr.bf16.gmra.mxu0 %v1300
  %v1350 = vpop.f32.mrf.mxu0
  %v1351 = vadd.f32 0.0, %v1350
  %v1352 = vpop.f32.mrf.mxu0
  %v1353 = vpop.f32.mrf.mxu0
  %v1354 = vadd.f32 0.0, %v1353
  %v1355 = vpop.f32.mrf.mxu0
  %1356 = vmatprep.mubr.bf16.mxu0 0
  %1357 = vmatmul.mubr.bf16.gmra.mxu0 %v1303
  %v1358 = vpop.f32.mrf.mxu0
  %v1359 = vadd.f32 0.0, %v1358
  %v1360 = vpop.f32.mrf.mxu0
  %v1361 = vpop.f32.mrf.mxu0
  %v1362 = vadd.f32 0.0, %v1361
  %v1363 = vpop.f32.mrf.mxu0
  %1364 = vmatprep.mubr.bf16.mxu0 0
  %1365 = vmatmul.mubr.bf16.gmra.mxu0 %v1306
  %v1366 = vpop.f32.mrf.mxu0
  %v1367 = vadd.f32 0.0, %v1366
  %v1368 = vpop.f32.mrf.mxu0
  %v1369 = vpop.f32.mrf.mxu0
  %v1370 = vadd.f32 0.0, %v1369
  %v1371 = vpop.f32.mrf.mxu0
  %1372 = vdwg.mxu0
  %v1375 = vunpack.c.l.b16 %v1274
  %v1376 = vunpack.c.l.b16 %v1275
  %v1377 = vpack.c.b16 %v1376, %v1375
  %1379 = vmatprep.subr.bf16.mxu0 0
  %1380 = vmatpush1.bf16.msra.mxu0 0
  %1381 = vmatprep.subr.bf16.mxu0 0
  %1382 = vmatpush1.bf16.msra.mxu0 0
  %1383 = vmatprep.subr.bf16.mxu0 0
  %1384 = vmatpush1.bf16.msra.mxu0 0
  %1385 = vmatprep.subr.bf16.mxu0 0
  %1386 = vmatpush1.bf16.msra.mxu0 0
  %1387 = vmatprep.subr.bf16.mxu0 0
  %1388 = vmatpush1.bf16.msra.mxu0 0
  %1389 = vmatprep.subr.bf16.mxu0 0
  %1390 = vmatpush1.bf16.msra.mxu0 0
  %1391 = vmatprep.subr.bf16.mxu0 0
  %1392 = vmatpush1.bf16.msra.mxu0 0
  %1393 = vmatprep.subr.bf16.mxu0 0
  %1394 = vmatpush1.bf16.msra.mxu0 %v1377
  %1395 = vmatprep.subr.bf16.mxu0 0
  %1396 = vmatpush2.bf16.msra.mxu0 0
  %1397 = vmatprep.subr.bf16.mxu0 0
  %1398 = vmatpush2.bf16.msra.mxu0 0
  %1399 = vmatprep.subr.bf16.mxu0 0
  %1400 = vmatpush2.bf16.msra.mxu0 0
  %1401 = vmatprep.subr.bf16.mxu0 0
  %1402 = vmatpush2.bf16.msra.mxu0 0
  %1403 = vmatprep.subr.bf16.mxu0 0
  %1404 = vmatpush2.bf16.msra.mxu0 0
  %1405 = vmatprep.subr.bf16.mxu0 0
  %1406 = vmatpush2.bf16.msra.mxu0 0
  %1407 = vmatprep.subr.bf16.mxu0 0
  %1408 = vmatpush2.bf16.msra.mxu0 0
  %1409 = vmatprep.subr.bf16.mxu0 0
  %1410 = vmatpush2.bf16.msra.mxu0 0
  %1411 = vmatprep.mubr.bf16.mxu0 0
  %1412 = vmatmul.mubr.bf16.gmra.mxu0 %v197
  %v1413 = vpop.f32.mrf.mxu0
  %v1414 = vadd.f32 %v1343, %v1413
  %v1415 = vpop.f32.mrf.mxu0
  %v1416 = vpop.f32.mrf.mxu0
  %v1417 = vadd.f32 %v1346, %v1416
  %v1418 = vpop.f32.mrf.mxu0
  %1419 = vmatprep.mubr.bf16.mxu0 0
  %1420 = vmatmul.mubr.bf16.gmra.mxu0 %v200
  %v1421 = vpop.f32.mrf.mxu0
  %v1422 = vadd.f32 %v1351, %v1421
  %v1423 = vpop.f32.mrf.mxu0
  %v1424 = vpop.f32.mrf.mxu0
  %v1425 = vadd.f32 %v1354, %v1424
  %v1426 = vpop.f32.mrf.mxu0
  %1427 = vmatprep.mubr.bf16.mxu0 0
  %1428 = vmatmul.mubr.bf16.gmra.mxu0 %v203
  %v1429 = vpop.f32.mrf.mxu0
  %v1430 = vadd.f32 %v1359, %v1429
  %v1431 = vpop.f32.mrf.mxu0
  %v1432 = vpop.f32.mrf.mxu0
  %v1433 = vadd.f32 %v1362, %v1432
  %v1434 = vpop.f32.mrf.mxu0
  %1435 = vmatprep.mubr.bf16.mxu0 0
  %1436 = vmatmul.mubr.bf16.gmra.mxu0 %v206
  %v1437 = vpop.f32.mrf.mxu0
  %v1438 = vadd.f32 %v1367, %v1437
  %v1439 = vpop.f32.mrf.mxu0
  %v1440 = vpop.f32.mrf.mxu0
  %v1441 = vadd.f32 %v1370, %v1440
  %v1442 = vpop.f32.mrf.mxu0
  %1443 = vdwg.mxu0
  %v1444 = vld [vmem:[%s14] sm:$0x1]
  %v1446 = vlaneseq
  %v1447 = vshrl.u32 %v1446, 7
  %v1448 = vsub.s32 0, %v1447
  %v1449 = vrot.slane %v1444, %v1448
  %v1451 = vadd.f32 %v1414, %v1449
  %v1452 = vadd.f32 %v1417, %v1449
  %v1453 = vadd.f32 %v1422, %v1449
  %v1454 = vadd.f32 %v1425, %v1449
  %v1455 = vadd.f32 %v1430, %v1449
  %v1456 = vadd.f32 %v1433, %v1449
  %v1457 = vadd.f32 %v1438, %v1449
  %v1458 = vadd.f32 %v1441, %v1449
  %v1459 = vmax.f32 %v1451, 0.0
  %v1460 = vmax.f32 %v1452, 0.0
  %v1461 = vmax.f32 %v1453, 0.0
  %v1462 = vmax.f32 %v1454, 0.0
  %v1463 = vmax.f32 %v1455, 0.0
  %v1464 = vmax.f32 %v1456, 0.0
  %v1465 = vmax.f32 %v1457, 0.0
  %v1466 = vmax.f32 %v1458, 0.0
  %v1467 = vpack.c.bf16 %v1460, %v1459
  %v1468 = vpack.c.bf16 %v1462, %v1461
  %v1469 = vpack.c.bf16 %v1464, %v1463
  %v1470 = vpack.c.bf16 %v1466, %v1465
  %v1471 = vld [vmem:[%s15] sm:$0xf]
  %v1472 = vld [vmem:[%s15 + $0x4] sm:$0xf]
  %v1473 = vld [vmem:[%s15 + $0x8] sm:$0xf]
  %v1474 = vld [vmem:[%s15 + $0xc] sm:$0xf]
  %v1475 = vld [vmem:[%s16] sm:$0x1]
  %v1477 = vlaneseq
  %v1478 = vshrl.u32 %v1477, 7
  %v1479 = vsub.s32 0, %v1478
  %v1480 = vrot.slane %v1475, %v1479
  %v1486 = vunpack.c.l.b16 %v1471
  %v1487 = vunpack.c.l.b16 %v1472
  %v1488 = vunpack.c.l.b16 %v1473
  %v1489 = vunpack.c.l.b16 %v1474
  %v1490 = vpack.c.b16 %v1487, %v1486
  %v1491 = vpack.c.b16 %v1489, %v1488
  %v1495 = vsel %vm561, %v1467, 0
  %v1498 = vsel %vm561, %v1468, 0
  %v1501 = vsel %vm561, %v1469, 0
  %v1504 = vsel %vm561, %v1470, 0
  %1506 = vmatprep.subr.bf16.mxu0 0
  %1507 = vmatpush1.bf16.msra.mxu0 0
  %1508 = vmatprep.subr.bf16.mxu0 0
  %1509 = vmatpush1.bf16.msra.mxu0 0
  %1510 = vmatprep.subr.bf16.mxu0 0
  %1511 = vmatpush1.bf16.msra.mxu0 0
  %1512 = vmatprep.subr.bf16.mxu0 0
  %1513 = vmatpush1.bf16.msra.mxu0 0
  %1514 = vmatprep.subr.bf16.mxu0 0
  %1515 = vmatpush1.bf16.msra.mxu0 0
  %1516 = vmatprep.subr.bf16.mxu0 0
  %1517 = vmatpush1.bf16.msra.mxu0 0
  %1518 = vmatprep.subr.bf16.mxu0 0
  %1519 = vmatpush1.bf16.msra.mxu0 %v1491
  %1520 = vmatprep.subr.bf16.mxu0 0
  %1521 = vmatpush1.bf16.msra.mxu0 %v1490
  %1522 = vmatprep.subr.bf16.mxu0 0
  %1523 = vmatpush2.bf16.msra.mxu0 0
  %1524 = vmatprep.subr.bf16.mxu0 0
  %1525 = vmatpush2.bf16.msra.mxu0 0
  %1526 = vmatprep.subr.bf16.mxu0 0
  %1527 = vmatpush2.bf16.msra.mxu0 0
  %1528 = vmatprep.subr.bf16.mxu0 0
  %1529 = vmatpush2.bf16.msra.mxu0 0
  %1530 = vmatprep.subr.bf16.mxu0 0
  %1531 = vmatpush2.bf16.msra.mxu0 0
  %1532 = vmatprep.subr.bf16.mxu0 0
  %1533 = vmatpush2.bf16.msra.mxu0 0
  %1534 = vmatprep.subr.bf16.mxu0 0
  %1535 = vmatpush2.bf16.msra.mxu0 0
  %1536 = vmatprep.subr.bf16.mxu0 0
  %1537 = vmatpush2.bf16.msra.mxu0 0
  %1538 = vmatprep.mubr.bf16.mxu0 0
  %1539 = vmatmul.mubr.bf16.gmra.mxu0 %v1495
  %v1540 = vpop.f32.mrf.mxu0
  %v1541 = vadd.f32 %v1480, %v1540
  %v1542 = vpop.f32.mrf.mxu0
  %v1543 = vpop.f32.mrf.mxu0
  %v1544 = vadd.f32 %v1480, %v1543
  %v1545 = vpop.f32.mrf.mxu0
  %1546 = vmatprep.mubr.bf16.mxu0 0
  %1547 = vmatmul.mubr.bf16.gmra.mxu0 %v1498
  %v1548 = vpop.f32.mrf.mxu0
  %v1549 = vadd.f32 %v1480, %v1548
  %v1550 = vpop.f32.mrf.mxu0
  %v1551 = vpop.f32.mrf.mxu0
  %v1552 = vadd.f32 %v1480, %v1551
  %v1553 = vpop.f32.mrf.mxu0
  %1554 = vmatprep.mubr.bf16.mxu0 0
  %1555 = vmatmul.mubr.bf16.gmra.mxu0 %v1501
  %v1556 = vpop.f32.mrf.mxu0
  %v1557 = vadd.f32 %v1480, %v1556
  %v1558 = vpop.f32.mrf.mxu0
  %v1559 = vpop.f32.mrf.mxu0
  %v1560 = vadd.f32 %v1480, %v1559
  %v1561 = vpop.f32.mrf.mxu0
  %1562 = vmatprep.mubr.bf16.mxu0 0
  %1563 = vmatmul.mubr.bf16.gmra.mxu0 %v1504
  %v1564 = vpop.f32.mrf.mxu0
  %v1565 = vadd.f32 %v1480, %v1564
  %v1566 = vpop.f32.mrf.mxu0
  %v1567 = vpop.f32.mrf.mxu0
  %v1568 = vadd.f32 %v1480, %v1567
  %v1569 = vpop.f32.mrf.mxu0
  %1570 = vdwg.mxu0
  %1571 = vmax.xlane.f32.xlu0 %v1541
  %v1572 = vpop.xlane.xlu0 %1571
  %1573 = vmax.xlane.f32.xlu0 %v1544
  %v1574 = vpop.xlane.xlu0 %1573
  %1575 = vmax.xlane.f32.xlu0 %v1549
  %v1576 = vpop.xlane.xlu0 %1575
  %1577 = vmax.xlane.f32.xlu0 %v1552
  %v1578 = vpop.xlane.xlu0 %1577
  %1579 = vmax.xlane.f32.xlu0 %v1557
  %v1580 = vpop.xlane.xlu0 %1579
  %1581 = vmax.xlane.f32.xlu0 %v1560
  %v1582 = vpop.xlane.xlu0 %1581
  %1583 = vmax.xlane.f32.xlu0 %v1565
  %v1584 = vpop.xlane.xlu0 %1583
  %1585 = vmax.xlane.f32.xlu0 %v1568
  %v1586 = vpop.xlane.xlu0 %1585
  %v1587 = vsub.f32 %v1541, %v1572
  %v1588 = vsub.f32 %v1544, %v1574
  %v1589 = vsub.f32 %v1549, %v1576
  %v1590 = vsub.f32 %v1552, %v1578
  %v1591 = vsub.f32 %v1557, %v1580
  %v1592 = vsub.f32 %v1560, %v1582
  %v1593 = vsub.f32 %v1565, %v1584
  %v1594 = vsub.f32 %v1568, %v1586
  %v1595 = vmul.f32 %v1587, 1.442695
  %v1596 = vpow.pop %v1595
  %v1597 = vmul.f32 %v1588, 1.442695
  %v1598 = vpow.pop %v1597
  %v1599 = vmul.f32 %v1589, 1.442695
  %v1600 = vpow.pop %v1599
  %v1601 = vmul.f32 %v1590, 1.442695
  %v1602 = vpow.pop %v1601
  %v1603 = vmul.f32 %v1591, 1.442695
  %v1604 = vpow.pop %v1603
  %v1605 = vmul.f32 %v1592, 1.442695
  %v1606 = vpow.pop %v1605
  %v1607 = vmul.f32 %v1593, 1.442695
  %v1608 = vpow.pop %v1607
  %v1609 = vmul.f32 %v1594, 1.442695
  %v1610 = vpow.pop %v1609
  %1611 = vadd.xlane.f32.xlu0 %v1596
  %v1612 = vpop.xlane.xlu0 %1611
  %1613 = vadd.xlane.f32.xlu0 %v1598
  %v1614 = vpop.xlane.xlu0 %1613
  %1615 = vadd.xlane.f32.xlu0 %v1600
  %v1616 = vpop.xlane.xlu0 %1615
  %1617 = vadd.xlane.f32.xlu0 %v1602
  %v1618 = vpop.xlane.xlu0 %1617
  %1619 = vadd.xlane.f32.xlu0 %v1604
  %v1620 = vpop.xlane.xlu0 %1619
  %1621 = vadd.xlane.f32.xlu0 %v1606
  %v1622 = vpop.xlane.xlu0 %1621
  %1623 = vadd.xlane.f32.xlu0 %v1608
  %v1624 = vpop.xlane.xlu0 %1623
  %1625 = vadd.xlane.f32.xlu0 %v1610
  %v1626 = vpop.xlane.xlu0 %1625
  %v1627 = vrcp.pop %v1612
  %v1628 = vrcp.pop %v1614
  %v1629 = vrcp.pop %v1616
  %v1630 = vrcp.pop %v1618
  %v1631 = vrcp.pop %v1620
  %v1632 = vrcp.pop %v1622
  %v1633 = vrcp.pop %v1624
  %v1634 = vrcp.pop %v1626
  %v1635 = vmul.f32 %v1596, %v1627
  %v1636 = vmul.f32 %v1598, %v1628
  %v1637 = vmul.f32 %v1600, %v1629
  %v1638 = vmul.f32 %v1602, %v1630
  %v1639 = vmul.f32 %v1604, %v1631
  %v1640 = vmul.f32 %v1606, %v1632
  %v1641 = vmul.f32 %v1608, %v1633
  %v1642 = vmul.f32 %v1610, %v1634
  %1643 = vst [vmem:[%s17] sm:$0xff] %v1635
  %1644 = vst [vmem:[%s17 + $0x8] sm:$0xff] %v1636
  %1645 = vst [vmem:[%s17 + $0x10] sm:$0xff] %v1637
  %1646 = vst [vmem:[%s17 + $0x18] sm:$0xff] %v1638
  %1647 = vst [vmem:[%s17 + $0x20] sm:$0xff] %v1639
  %1648 = vst [vmem:[%s17 + $0x28] sm:$0xff] %v1640
  %1649 = vst [vmem:[%s17 + $0x30] sm:$0xff] %v1641
  %1650 = vst [vmem:[%s17 + $0x38] sm:$0xff] %v1642
  // Predicated region
  $region70: #{node_glam_forward.1} parent=0 // pred_check
    _
  $region71: #{node_glam_forward.1} parent=0 // pred_check_branch
    %1652 = sbr.rel (0) target = $region73
  $region72: #{node_glam_forward.1} parent=0 // pred_region
    _
  $region73: #{node_glam_forward.1} parent=0 // pred_fallthru
    _
  // Predicated region
  $region74: #{node_glam_forward.1} parent=0 // pred_check
    _
  $region75: #{node_glam_forward.1} parent=0 // pred_check_branch
    %1654 = sbr.rel (0) target = $region77
  $region76: #{node_glam_forward.1} parent=0 // pred_region
    _
  $region77: #{node_glam_forward.1} parent=0 // pred_fallthru
    _

</llo_original>
